<compile_context>
chip_gen: v7x
topology: tpu7x:2x2x1
jax: 0.10.0
libtpu: 0.0.40
codegen_flags: <defaults>
</compile_context>

<pallas_src>
import numpy as np
import jax
import jax.numpy as jnp
from jax import lax
from jax.experimental import pallas as pl
from jax.experimental.pallas import tpu as pltpu


def lstm_kernel(x_ref, wih_ref, b_ref, whh_ref, wout_ref, bout_ref,
                pred_ref, xw_sc, hs_sc):
    # x_ref    : (T, 1)      input sequence (input_size == 1)
    # wih_ref  : (1, 4*Hp)   gate column blocks in order i | f | o | g
    # b_ref    : (1, 4*Hp)   fused b_ih + b_hh, same gate order, padded
    # whh_ref  : (Hp, 4*Hp)
    # wout_ref : (Hp, Op)
    # bout_ref : (1, Op)
    # pred_ref : (T, Op)
    # xw_sc    : (T, 4*Hp) VMEM scratch: per-step input contribution to gates
    # hs_sc    : (T, Hp)   VMEM scratch: every h_t, consumed by the final Linear
    T = x_ref.shape[0]
    Hp = whh_ref.shape[0]

    # Input projection with K=1: VPU broadcast multiply (no MXU pass), staged
    # into VMEM so the unrolled recurrence doesn't keep 4*T vregs live.
    xw_sc[...] = x_ref[...] * wih_ref[...] + b_ref[...]      # (T, 4*Hp)

    h = jnp.zeros((1, Hp), jnp.float32)
    c = jnp.zeros((1, Hp), jnp.float32)

    # T is a Python int -> full static unroll (LLO sees the whole chain).
    for t in range(T):
        # Single fused recurrent matmul per step: (1,Hp) @ (Hp,4Hp).
        # RHS is streamed from VMEM each step (no 64-vreg whh hoist);
        # the per-step input term is a cheap (1, 4Hp) VMEM row load.
        gates = xw_sc[t:t + 1, :] + jnp.dot(
            h, whh_ref[...], preferred_element_type=jnp.float32)
        sig = jax.nn.sigmoid(gates[:, :3 * Hp])              # i | f | o, one EUP pass
        g_g = jnp.tanh(gates[:, 3 * Hp:])                    # g
        i_g = sig[:, 0 * Hp:1 * Hp]
        f_g = sig[:, 1 * Hp:2 * Hp]
        o_g = sig[:, 2 * Hp:3 * Hp]

        c = f_g * c + i_g * g_g
        h = o_g * jnp.tanh(c)

        hs_sc[t:t + 1, :] = h                                # off the h->h chain

    # Output Linear hoisted out of the loop: one matmul + lane-dense store.
    pred_ref[...] = (jnp.dot(hs_sc[...], wout_ref[...],
                             preferred_element_type=jnp.float32)
                     + bout_ref[...])


def _prep_params(params, Hp, Op):
    """Reorder gates to [i, f, o, g], transpose, fuse biases, zero-pad to (Hp, Op)."""
    wih, whh, bih, bhh, wlin, blin = params
    H = whh.shape[1]
    O = wlin.shape[0]
    order = (0, 1, 3, 2)            # PyTorch order is i, f, g, o
    pad_h = Hp - H

    def gate_blocks(w):             # (4H, D) -> reordered tuple of (H, D)
        return tuple(w[k * H:(k + 1) * H] for k in order)

    wih_p = jnp.concatenate(
        [jnp.pad(g.T, ((0, 0), (0, pad_h))) for g in gate_blocks(wih)],
        axis=1).astype(jnp.float32)                        # (I, 4*Hp)

    whh_p = jnp.concatenate(
        [jnp.pad(g.T, ((0, pad_h), (0, pad_h))) for g in gate_blocks(whh)],
        axis=1).astype(jnp.float32)                        # (Hp, 4*Hp)

    b = bih + bhh
    b_p = jnp.concatenate(
        [jnp.pad(b[k * H:(k + 1) * H], (0, pad_h)) for k in order]
    ).reshape(1, 4 * Hp).astype(jnp.float32)               # (1, 4*Hp)

    wout_p = jnp.pad(wlin.T, ((0, pad_h), (0, Op - O))).astype(jnp.float32)  # (Hp, Op)
    bout_p = jnp.pad(blin, (0, Op - O)).reshape(1, Op).astype(jnp.float32)   # (1, Op)

    return wih_p, whh_p, b_p, wout_p, bout_p


def make_lstm_forward(params):
    """Prepare padded/reordered weights ONCE and return a jitted forward fn.

    Returned fn: x (T,) or (T, input_size) -> last 5 predictions, shape (5, output).
    """
    wih, whh, bih, bhh, wlin, blin = params
    H = whh.shape[1]
    I = wih.shape[1]
    O = wlin.shape[0]
    assert I == 1, "broadcast input projection in the kernel assumes input_size == 1"

    Hp = ((H + 127) // 128) * 128   # 100 -> 128 (lane/vreg aligned gate slices)
    Op = ((O + 127) // 128) * 128   # 5   -> 128 (lane-dense output store)

    # Weight prep hoisted out of the per-call path (params are static).
    wih_p, whh_p, b_p, wout_p, bout_p = [
        jax.device_put(p) for p in _prep_params(params, Hp, Op)]

    vmem = lambda: pl.BlockSpec(memory_space=pltpu.MemorySpace.VMEM)

    @jax.jit
    def forward(x):
        T = x.shape[0]
        assert T >= 5, "module returns predictions[-5:], need T >= 5"
        x2d = x.reshape(T, I).astype(jnp.float32)
        pred = pl.pallas_call(
            lstm_kernel,
            out_shape=jax.ShapeDtypeStruct((T, Op), jnp.float32),
            in_specs=[vmem() for _ in range(6)],
            out_specs=vmem(),
            scratch_shapes=[pltpu.VMEM((T, 4 * Hp), jnp.float32),
                            pltpu.VMEM((T, Hp), jnp.float32)],
        )(x2d, wih_p, b_p, whh_p, wout_p, bout_p)
        return pred[-5:, :O]

    return forward


def lstm_reference(x, params):
    """Pure-JAX reference (mirrors torch.nn.LSTM + Linear, batch=1)."""
    wih, whh, bih, bhh, wlin, blin = params
    H = whh.shape[1]
    I = wih.shape[1]
    T = x.shape[0]
    x2d = x.reshape(T, I).astype(jnp.float32)

    def step(carry, x_t):
        h, c = carry
        gates = x_t @ wih.T + bih + h @ whh.T + bhh
        i_g = jax.nn.sigmoid(gates[0:H])
        f_g = jax.nn.sigmoid(gates[H:2 * H])
        g_g = jnp.tanh(gates[2 * H:3 * H])
        o_g = jax.nn.sigmoid(gates[3 * H:4 * H])
        c = f_g * c + i_g * g_g
        h = o_g * jnp.tanh(c)
        return (h, c), h

    (_, _), hs = lax.scan(step, (jnp.zeros(H), jnp.zeros(H)), x2d)
    pred = hs @ wlin.T + blin
    return pred[-5:]


def init_params(key, input_size=1, hidden=100, output=5):
    """Same shapes/ranges as torch defaults (U[-1/sqrt(H), 1/sqrt(H)])."""
    k = 1.0 / np.sqrt(hidden)
    ks = jax.random.split(key, 6)
    wih = jax.random.uniform(ks[0], (4 * hidden, input_size), jnp.float32, -k, k)
    whh = jax.random.uniform(ks[1], (4 * hidden, hidden), jnp.float32, -k, k)
    bih = jax.random.uniform(ks[2], (4 * hidden,), jnp.float32, -k, k)
    bhh = jax.random.uniform(ks[3], (4 * hidden,), jnp.float32, -k, k)
    wlin = jax.random.uniform(ks[4], (output, hidden), jnp.float32, -k, k)
    blin = jax.random.uniform(ks[5], (output,), jnp.float32, -k, k)
    return (wih, whh, bih, bhh, wlin, blin)


if __name__ == "__main__":
    key = jax.random.PRNGKey(0)
    pkey, xkey = jax.random.split(key)

    input_size, hidden, output = 1, 100, 5
    seq_len = 8

    params = init_params(pkey, input_size, hidden, output)
    x = jax.random.normal(xkey, (seq_len,), jnp.float32)   # input_seq, as in the module

    forward = make_lstm_forward(params)                    # weight prep done once here
    out = jax.block_until_ready(forward(x))
    ref = jax.block_until_ready(lstm_reference(x, params))

    assert out.shape == (5, output), out.shape
    np.testing.assert_allclose(np.asarray(out), np.asarray(ref), rtol=1e-4, atol=1e-5)

    print("KERNEL_OK")
</pallas_src>

<mosaic_0001>
module attributes {stable_mosaic.version = 11 : i64} {
  func.func @lstm_kernel(%arg0: memref<8x1xf32, #tpu.memory_space<vmem>>, %arg1: memref<1x512xf32, #tpu.memory_space<vmem>>, %arg2: memref<1x512xf32, #tpu.memory_space<vmem>>, %arg3: memref<128x512xf32, #tpu.memory_space<vmem>>, %arg4: memref<128x128xf32, #tpu.memory_space<vmem>>, %arg5: memref<1x128xf32, #tpu.memory_space<vmem>>, %arg6: memref<8x128xf32, #tpu.memory_space<vmem>>, %arg7: memref<8x512xf32, #tpu.memory_space<vmem>>, %arg8: memref<8x128xf32, #tpu.memory_space<vmem>>) attributes {dimension_semantics = [], scalar_prefetch = 0 : i64, scratch_operands = 2 : i64, tpu.core_type = #tpu.core_type<tc>} {
    %c0 = arith.constant 0 : index
    %c0_0 = arith.constant 0 : index
    %0 = vector.load %arg0[%c0, %c0_0] : memref<8x1xf32, #tpu.memory_space<vmem>>, vector<8x1xf32>
    %c0_1 = arith.constant 0 : index
    %c0_2 = arith.constant 0 : index
    %1 = vector.load %arg1[%c0_1, %c0_2] : memref<1x512xf32, #tpu.memory_space<vmem>>, vector<1x512xf32>
    %2 = vector.broadcast %0 : vector<8x1xf32> to vector<8x512xf32>
    %3 = vector.broadcast %1 : vector<1x512xf32> to vector<8x512xf32>
    %4 = arith.mulf %2, %3 : vector<8x512xf32>
    %c0_3 = arith.constant 0 : index
    %c0_4 = arith.constant 0 : index
    %5 = vector.load %arg2[%c0_3, %c0_4] : memref<1x512xf32, #tpu.memory_space<vmem>>, vector<1x512xf32>
    %6 = vector.broadcast %5 : vector<1x512xf32> to vector<8x512xf32>
    %7 = arith.addf %4, %6 : vector<8x512xf32>
    %c0_5 = arith.constant 0 : index
    %c0_6 = arith.constant 0 : index
    %8 = vector.load %arg7[%c0_5, %c0_6] : memref<8x512xf32, #tpu.memory_space<vmem>>, vector<8x512xf32>
    tpu.vector_store %arg7[%c0_5, %c0_6], %7 {strides = array<i32>} : memref<8x512xf32, #tpu.memory_space<vmem>>, vector<8x512xf32>,
    %cst = arith.constant 0.000000e+00 : f32
    %9 = vector.broadcast %cst : f32 to vector<1x128xf32>
    %cst_7 = arith.constant 0.000000e+00 : f32
    %10 = vector.broadcast %cst_7 : f32 to vector<1x128xf32>
    %c0_8 = arith.constant 0 : index
    %c0_9 = arith.constant 0 : index
    %11 = vector.load %arg7[%c0_8, %c0_9] : memref<8x512xf32, #tpu.memory_space<vmem>>, vector<1x512xf32>
    %c0_10 = arith.constant 0 : index
    %c0_11 = arith.constant 0 : index
    %12 = vector.load %arg3[%c0_10, %c0_11] : memref<128x512xf32, #tpu.memory_space<vmem>>, vector<128x512xf32>
    %cst_12 = arith.constant dense<0.000000e+00> : vector<1x512xf32>
    %13 = tpu.matmul %9, %12, %cst_12 {dimension_numbers = #tpu.dot_dimension_numbers<[1], [0], [0], [1], [0, 0, 1, 1], [], []>} : vector<1x128xf32>, vector<128x512xf32>, vector<1x512xf32> -> vector<1x512xf32>
    %14 = arith.addf %11, %13 : vector<1x512xf32>
    %15 = vector.extract_strided_slice %14 {offsets = [0, 0], sizes = [1, 384], strides = [1, 1]} : vector<1x512xf32> to vector<1x384xf32>
    %16 = arith.negf %15 : vector<1x384xf32>
    %17 = math.exp %16 : vector<1x384xf32>
    %cst_13 = arith.constant 1.000000e+00 : f32
    %18 = vector.broadcast %cst_13 : f32 to vector<1x384xf32>
    %19 = arith.addf %18, %17 : vector<1x384xf32>
    %20 = arith.divf %18, %19 : vector<1x384xf32>
    %21 = vector.extract_strided_slice %14 {offsets = [0, 384], sizes = [1, 128], strides = [1, 1]} : vector<1x512xf32> to vector<1x128xf32>
    %22 = math.tanh %21 : vector<1x128xf32>
    %23 = vector.extract_strided_slice %20 {offsets = [0, 0], sizes = [1, 128], strides = [1, 1]} : vector<1x384xf32> to vector<1x128xf32>
    %24 = vector.extract_strided_slice %20 {offsets = [0, 128], sizes = [1, 128], strides = [1, 1]} : vector<1x384xf32> to vector<1x128xf32>
    %25 = vector.extract_strided_slice %20 {offsets = [0, 256], sizes = [1, 128], strides = [1, 1]} : vector<1x384xf32> to vector<1x128xf32>
    %26 = arith.mulf %24, %10 : vector<1x128xf32>
    %27 = arith.mulf %23, %22 : vector<1x128xf32>
    %28 = arith.addf %26, %27 : vector<1x128xf32>
    %29 = math.tanh %28 : vector<1x128xf32>
    %30 = arith.mulf %25, %29 : vector<1x128xf32>
    %c0_14 = arith.constant 0 : index
    %c0_15 = arith.constant 0 : index
    %31 = vector.load %arg8[%c0_14, %c0_15] : memref<8x128xf32, #tpu.memory_space<vmem>>, vector<1x128xf32>
    tpu.vector_store %arg8[%c0_14, %c0_15], %30 {strides = array<i32>} : memref<8x128xf32, #tpu.memory_space<vmem>>, vector<1x128xf32>,
    %c1 = arith.constant 1 : index
    %c0_16 = arith.constant 0 : index
    %32 = vector.load %arg7[%c1, %c0_16] : memref<8x512xf32, #tpu.memory_space<vmem>>, vector<1x512xf32>
    %c0_17 = arith.constant 0 : index
    %c0_18 = arith.constant 0 : index
    %33 = vector.load %arg3[%c0_17, %c0_18] : memref<128x512xf32, #tpu.memory_space<vmem>>, vector<128x512xf32>
    %cst_19 = arith.constant dense<0.000000e+00> : vector<1x512xf32>
    %34 = tpu.matmul %30, %33, %cst_19 {dimension_numbers = #tpu.dot_dimension_numbers<[1], [0], [0], [1], [0, 0, 1, 1], [], []>} : vector<1x128xf32>, vector<128x512xf32>, vector<1x512xf32> -> vector<1x512xf32>
    %35 = arith.addf %32, %34 : vector<1x512xf32>
    %36 = vector.extract_strided_slice %35 {offsets = [0, 0], sizes = [1, 384], strides = [1, 1]} : vector<1x512xf32> to vector<1x384xf32>
    %37 = arith.negf %36 : vector<1x384xf32>
    %38 = math.exp %37 : vector<1x384xf32>
    %cst_20 = arith.constant 1.000000e+00 : f32
    %39 = vector.broadcast %cst_20 : f32 to vector<1x384xf32>
    %40 = arith.addf %39, %38 : vector<1x384xf32>
    %41 = arith.divf %39, %40 : vector<1x384xf32>
    %42 = vector.extract_strided_slice %35 {offsets = [0, 384], sizes = [1, 128], strides = [1, 1]} : vector<1x512xf32> to vector<1x128xf32>
    %43 = math.tanh %42 : vector<1x128xf32>
    %44 = vector.extract_strided_slice %41 {offsets = [0, 0], sizes = [1, 128], strides = [1, 1]} : vector<1x384xf32> to vector<1x128xf32>
    %45 = vector.extract_strided_slice %41 {offsets = [0, 128], sizes = [1, 128], strides = [1, 1]} : vector<1x384xf32> to vector<1x128xf32>
    %46 = vector.extract_strided_slice %41 {offsets = [0, 256], sizes = [1, 128], strides = [1, 1]} : vector<1x384xf32> to vector<1x128xf32>
    %47 = arith.mulf %45, %28 : vector<1x128xf32>
    %48 = arith.mulf %44, %43 : vector<1x128xf32>
    %49 = arith.addf %47, %48 : vector<1x128xf32>
    %50 = math.tanh %49 : vector<1x128xf32>
    %51 = arith.mulf %46, %50 : vector<1x128xf32>
    %c1_21 = arith.constant 1 : index
    %c0_22 = arith.constant 0 : index
    %52 = vector.load %arg8[%c1_21, %c0_22] : memref<8x128xf32, #tpu.memory_space<vmem>>, vector<1x128xf32>
    tpu.vector_store %arg8[%c1_21, %c0_22], %51 {strides = array<i32>} : memref<8x128xf32, #tpu.memory_space<vmem>>, vector<1x128xf32>,
    %c2 = arith.constant 2 : index
    %c0_23 = arith.constant 0 : index
    %53 = vector.load %arg7[%c2, %c0_23] : memref<8x512xf32, #tpu.memory_space<vmem>>, vector<1x512xf32>
    %c0_24 = arith.constant 0 : index
    %c0_25 = arith.constant 0 : index
    %54 = vector.load %arg3[%c0_24, %c0_25] : memref<128x512xf32, #tpu.memory_space<vmem>>, vector<128x512xf32>
    %cst_26 = arith.constant dense<0.000000e+00> : vector<1x512xf32>
    %55 = tpu.matmul %51, %54, %cst_26 {dimension_numbers = #tpu.dot_dimension_numbers<[1], [0], [0], [1], [0, 0, 1, 1], [], []>} : vector<1x128xf32>, vector<128x512xf32>, vector<1x512xf32> -> vector<1x512xf32>
    %56 = arith.addf %53, %55 : vector<1x512xf32>
    %57 = vector.extract_strided_slice %56 {offsets = [0, 0], sizes = [1, 384], strides = [1, 1]} : vector<1x512xf32> to vector<1x384xf32>
    %58 = arith.negf %57 : vector<1x384xf32>
    %59 = math.exp %58 : vector<1x384xf32>
    %cst_27 = arith.constant 1.000000e+00 : f32
    %60 = vector.broadcast %cst_27 : f32 to vector<1x384xf32>
    %61 = arith.addf %60, %59 : vector<1x384xf32>
    %62 = arith.divf %60, %61 : vector<1x384xf32>
    %63 = vector.extract_strided_slice %56 {offsets = [0, 384], sizes = [1, 128], strides = [1, 1]} : vector<1x512xf32> to vector<1x128xf32>
    %64 = math.tanh %63 : vector<1x128xf32>
    %65 = vector.extract_strided_slice %62 {offsets = [0, 0], sizes = [1, 128], strides = [1, 1]} : vector<1x384xf32> to vector<1x128xf32>
    %66 = vector.extract_strided_slice %62 {offsets = [0, 128], sizes = [1, 128], strides = [1, 1]} : vector<1x384xf32> to vector<1x128xf32>
    %67 = vector.extract_strided_slice %62 {offsets = [0, 256], sizes = [1, 128], strides = [1, 1]} : vector<1x384xf32> to vector<1x128xf32>
    %68 = arith.mulf %66, %49 : vector<1x128xf32>
    %69 = arith.mulf %65, %64 : vector<1x128xf32>
    %70 = arith.addf %68, %69 : vector<1x128xf32>
    %71 = math.tanh %70 : vector<1x128xf32>
    %72 = arith.mulf %67, %71 : vector<1x128xf32>
    %c2_28 = arith.constant 2 : index
    %c0_29 = arith.constant 0 : index
    %73 = vector.load %arg8[%c2_28, %c0_29] : memref<8x128xf32, #tpu.memory_space<vmem>>, vector<1x128xf32>
    tpu.vector_store %arg8[%c2_28, %c0_29], %72 {strides = array<i32>} : memref<8x128xf32, #tpu.memory_space<vmem>>, vector<1x128xf32>,
    %c3 = arith.constant 3 : index
    %c0_30 = arith.constant 0 : index
    %74 = vector.load %arg7[%c3, %c0_30] : memref<8x512xf32, #tpu.memory_space<vmem>>, vector<1x512xf32>
    %c0_31 = arith.constant 0 : index
    %c0_32 = arith.constant 0 : index
    %75 = vector.load %arg3[%c0_31, %c0_32] : memref<128x512xf32, #tpu.memory_space<vmem>>, vector<128x512xf32>
    %cst_33 = arith.constant dense<0.000000e+00> : vector<1x512xf32>
    %76 = tpu.matmul %72, %75, %cst_33 {dimension_numbers = #tpu.dot_dimension_numbers<[1], [0], [0], [1], [0, 0, 1, 1], [], []>} : vector<1x128xf32>, vector<128x512xf32>, vector<1x512xf32> -> vector<1x512xf32>
    %77 = arith.addf %74, %76 : vector<1x512xf32>
    %78 = vector.extract_strided_slice %77 {offsets = [0, 0], sizes = [1, 384], strides = [1, 1]} : vector<1x512xf32> to vector<1x384xf32>
    %79 = arith.negf %78 : vector<1x384xf32>
    %80 = math.exp %79 : vector<1x384xf32>
    %cst_34 = arith.constant 1.000000e+00 : f32
    %81 = vector.broadcast %cst_34 : f32 to vector<1x384xf32>
    %82 = arith.addf %81, %80 : vector<1x384xf32>
    %83 = arith.divf %81, %82 : vector<1x384xf32>
    %84 = vector.extract_strided_slice %77 {offsets = [0, 384], sizes = [1, 128], strides = [1, 1]} : vector<1x512xf32> to vector<1x128xf32>
    %85 = math.tanh %84 : vector<1x128xf32>
    %86 = vector.extract_strided_slice %83 {offsets = [0, 0], sizes = [1, 128], strides = [1, 1]} : vector<1x384xf32> to vector<1x128xf32>
    %87 = vector.extract_strided_slice %83 {offsets = [0, 128], sizes = [1, 128], strides = [1, 1]} : vector<1x384xf32> to vector<1x128xf32>
    %88 = vector.extract_strided_slice %83 {offsets = [0, 256], sizes = [1, 128], strides = [1, 1]} : vector<1x384xf32> to vector<1x128xf32>
    %89 = arith.mulf %87, %70 : vector<1x128xf32>
    %90 = arith.mulf %86, %85 : vector<1x128xf32>
    %91 = arith.addf %89, %90 : vector<1x128xf32>
    %92 = math.tanh %91 : vector<1x128xf32>
    %93 = arith.mulf %88, %92 : vector<1x128xf32>
    %c3_35 = arith.constant 3 : index
    %c0_36 = arith.constant 0 : index
    %94 = vector.load %arg8[%c3_35, %c0_36] : memref<8x128xf32, #tpu.memory_space<vmem>>, vector<1x128xf32>
    tpu.vector_store %arg8[%c3_35, %c0_36], %93 {strides = array<i32>} : memref<8x128xf32, #tpu.memory_space<vmem>>, vector<1x128xf32>,
    %c4 = arith.constant 4 : index
    %c0_37 = arith.constant 0 : index
    %95 = vector.load %arg7[%c4, %c0_37] : memref<8x512xf32, #tpu.memory_space<vmem>>, vector<1x512xf32>
    %c0_38 = arith.constant 0 : index
    %c0_39 = arith.constant 0 : index
    %96 = vector.load %arg3[%c0_38, %c0_39] : memref<128x512xf32, #tpu.memory_space<vmem>>, vector<128x512xf32>
    %cst_40 = arith.constant dense<0.000000e+00> : vector<1x512xf32>
    %97 = tpu.matmul %93, %96, %cst_40 {dimension_numbers = #tpu.dot_dimension_numbers<[1], [0], [0], [1], [0, 0, 1, 1], [], []>} : vector<1x128xf32>, vector<128x512xf32>, vector<1x512xf32> -> vector<1x512xf32>
    %98 = arith.addf %95, %97 : vector<1x512xf32>
    %99 = vector.extract_strided_slice %98 {offsets = [0, 0], sizes = [1, 384], strides = [1, 1]} : vector<1x512xf32> to vector<1x384xf32>
    %100 = arith.negf %99 : vector<1x384xf32>
    %101 = math.exp %100 : vector<1x384xf32>
    %cst_41 = arith.constant 1.000000e+00 : f32
    %102 = vector.broadcast %cst_41 : f32 to vector<1x384xf32>
    %103 = arith.addf %102, %101 : vector<1x384xf32>
    %104 = arith.divf %102, %103 : vector<1x384xf32>
    %105 = vector.extract_strided_slice %98 {offsets = [0, 384], sizes = [1, 128], strides = [1, 1]} : vector<1x512xf32> to vector<1x128xf32>
    %106 = math.tanh %105 : vector<1x128xf32>
    %107 = vector.extract_strided_slice %104 {offsets = [0, 0], sizes = [1, 128], strides = [1, 1]} : vector<1x384xf32> to vector<1x128xf32>
    %108 = vector.extract_strided_slice %104 {offsets = [0, 128], sizes = [1, 128], strides = [1, 1]} : vector<1x384xf32> to vector<1x128xf32>
    %109 = vector.extract_strided_slice %104 {offsets = [0, 256], sizes = [1, 128], strides = [1, 1]} : vector<1x384xf32> to vector<1x128xf32>
    %110 = arith.mulf %108, %91 : vector<1x128xf32>
    %111 = arith.mulf %107, %106 : vector<1x128xf32>
    %112 = arith.addf %110, %111 : vector<1x128xf32>
    %113 = math.tanh %112 : vector<1x128xf32>
    %114 = arith.mulf %109, %113 : vector<1x128xf32>
    %c4_42 = arith.constant 4 : index
    %c0_43 = arith.constant 0 : index
    %115 = vector.load %arg8[%c4_42, %c0_43] : memref<8x128xf32, #tpu.memory_space<vmem>>, vector<1x128xf32>
    tpu.vector_store %arg8[%c4_42, %c0_43], %114 {strides = array<i32>} : memref<8x128xf32, #tpu.memory_space<vmem>>, vector<1x128xf32>,
    %c5 = arith.constant 5 : index
    %c0_44 = arith.constant 0 : index
    %116 = vector.load %arg7[%c5, %c0_44] : memref<8x512xf32, #tpu.memory_space<vmem>>, vector<1x512xf32>
    %c0_45 = arith.constant 0 : index
    %c0_46 = arith.constant 0 : index
    %117 = vector.load %arg3[%c0_45, %c0_46] : memref<128x512xf32, #tpu.memory_space<vmem>>, vector<128x512xf32>
    %cst_47 = arith.constant dense<0.000000e+00> : vector<1x512xf32>
    %118 = tpu.matmul %114, %117, %cst_47 {dimension_numbers = #tpu.dot_dimension_numbers<[1], [0], [0], [1], [0, 0, 1, 1], [], []>} : vector<1x128xf32>, vector<128x512xf32>, vector<1x512xf32> -> vector<1x512xf32>
    %119 = arith.addf %116, %118 : vector<1x512xf32>
    %120 = vector.extract_strided_slice %119 {offsets = [0, 0], sizes = [1, 384], strides = [1, 1]} : vector<1x512xf32> to vector<1x384xf32>
    %121 = arith.negf %120 : vector<1x384xf32>
    %122 = math.exp %121 : vector<1x384xf32>
    %cst_48 = arith.constant 1.000000e+00 : f32
    %123 = vector.broadcast %cst_48 : f32 to vector<1x384xf32>
    %124 = arith.addf %123, %122 : vector<1x384xf32>
    %125 = arith.divf %123, %124 : vector<1x384xf32>
    %126 = vector.extract_strided_slice %119 {offsets = [0, 384], sizes = [1, 128], strides = [1, 1]} : vector<1x512xf32> to vector<1x128xf32>
    %127 = math.tanh %126 : vector<1x128xf32>
    %128 = vector.extract_strided_slice %125 {offsets = [0, 0], sizes = [1, 128], strides = [1, 1]} : vector<1x384xf32> to vector<1x128xf32>
    %129 = vector.extract_strided_slice %125 {offsets = [0, 128], sizes = [1, 128], strides = [1, 1]} : vector<1x384xf32> to vector<1x128xf32>
    %130 = vector.extract_strided_slice %125 {offsets = [0, 256], sizes = [1, 128], strides = [1, 1]} : vector<1x384xf32> to vector<1x128xf32>
    %131 = arith.mulf %129, %112 : vector<1x128xf32>
    %132 = arith.mulf %128, %127 : vector<1x128xf32>
    %133 = arith.addf %131, %132 : vector<1x128xf32>
    %134 = math.tanh %133 : vector<1x128xf32>
    %135 = arith.mulf %130, %134 : vector<1x128xf32>
    %c5_49 = arith.constant 5 : index
    %c0_50 = arith.constant 0 : index
    %136 = vector.load %arg8[%c5_49, %c0_50] : memref<8x128xf32, #tpu.memory_space<vmem>>, vector<1x128xf32>
    tpu.vector_store %arg8[%c5_49, %c0_50], %135 {strides = array<i32>} : memref<8x128xf32, #tpu.memory_space<vmem>>, vector<1x128xf32>,
    %c6 = arith.constant 6 : index
    %c0_51 = arith.constant 0 : index
    %137 = vector.load %arg7[%c6, %c0_51] : memref<8x512xf32, #tpu.memory_space<vmem>>, vector<1x512xf32>
    %c0_52 = arith.constant 0 : index
    %c0_53 = arith.constant 0 : index
    %138 = vector.load %arg3[%c0_52, %c0_53] : memref<128x512xf32, #tpu.memory_space<vmem>>, vector<128x512xf32>
    %cst_54 = arith.constant dense<0.000000e+00> : vector<1x512xf32>
    %139 = tpu.matmul %135, %138, %cst_54 {dimension_numbers = #tpu.dot_dimension_numbers<[1], [0], [0], [1], [0, 0, 1, 1], [], []>} : vector<1x128xf32>, vector<128x512xf32>, vector<1x512xf32> -> vector<1x512xf32>
    %140 = arith.addf %137, %139 : vector<1x512xf32>
    %141 = vector.extract_strided_slice %140 {offsets = [0, 0], sizes = [1, 384], strides = [1, 1]} : vector<1x512xf32> to vector<1x384xf32>
    %142 = arith.negf %141 : vector<1x384xf32>
    %143 = math.exp %142 : vector<1x384xf32>
    %cst_55 = arith.constant 1.000000e+00 : f32
    %144 = vector.broadcast %cst_55 : f32 to vector<1x384xf32>
    %145 = arith.addf %144, %143 : vector<1x384xf32>
    %146 = arith.divf %144, %145 : vector<1x384xf32>
    %147 = vector.extract_strided_slice %140 {offsets = [0, 384], sizes = [1, 128], strides = [1, 1]} : vector<1x512xf32> to vector<1x128xf32>
    %148 = math.tanh %147 : vector<1x128xf32>
    %149 = vector.extract_strided_slice %146 {offsets = [0, 0], sizes = [1, 128], strides = [1, 1]} : vector<1x384xf32> to vector<1x128xf32>
    %150 = vector.extract_strided_slice %146 {offsets = [0, 128], sizes = [1, 128], strides = [1, 1]} : vector<1x384xf32> to vector<1x128xf32>
    %151 = vector.extract_strided_slice %146 {offsets = [0, 256], sizes = [1, 128], strides = [1, 1]} : vector<1x384xf32> to vector<1x128xf32>
    %152 = arith.mulf %150, %133 : vector<1x128xf32>
    %153 = arith.mulf %149, %148 : vector<1x128xf32>
    %154 = arith.addf %152, %153 : vector<1x128xf32>
    %155 = math.tanh %154 : vector<1x128xf32>
    %156 = arith.mulf %151, %155 : vector<1x128xf32>
    %c6_56 = arith.constant 6 : index
    %c0_57 = arith.constant 0 : index
    %157 = vector.load %arg8[%c6_56, %c0_57] : memref<8x128xf32, #tpu.memory_space<vmem>>, vector<1x128xf32>
    tpu.vector_store %arg8[%c6_56, %c0_57], %156 {strides = array<i32>} : memref<8x128xf32, #tpu.memory_space<vmem>>, vector<1x128xf32>,
    %c7 = arith.constant 7 : index
    %c0_58 = arith.constant 0 : index
    %158 = vector.load %arg7[%c7, %c0_58] : memref<8x512xf32, #tpu.memory_space<vmem>>, vector<1x512xf32>
    %c0_59 = arith.constant 0 : index
    %c0_60 = arith.constant 0 : index
    %159 = vector.load %arg3[%c0_59, %c0_60] : memref<128x512xf32, #tpu.memory_space<vmem>>, vector<128x512xf32>
    %cst_61 = arith.constant dense<0.000000e+00> : vector<1x512xf32>
    %160 = tpu.matmul %156, %159, %cst_61 {dimension_numbers = #tpu.dot_dimension_numbers<[1], [0], [0], [1], [0, 0, 1, 1], [], []>} : vector<1x128xf32>, vector<128x512xf32>, vector<1x512xf32> -> vector<1x512xf32>
    %161 = arith.addf %158, %160 : vector<1x512xf32>
    %162 = vector.extract_strided_slice %161 {offsets = [0, 0], sizes = [1, 384], strides = [1, 1]} : vector<1x512xf32> to vector<1x384xf32>
    %163 = arith.negf %162 : vector<1x384xf32>
    %164 = math.exp %163 : vector<1x384xf32>
    %cst_62 = arith.constant 1.000000e+00 : f32
    %165 = vector.broadcast %cst_62 : f32 to vector<1x384xf32>
    %166 = arith.addf %165, %164 : vector<1x384xf32>
    %167 = arith.divf %165, %166 : vector<1x384xf32>
    %168 = vector.extract_strided_slice %161 {offsets = [0, 384], sizes = [1, 128], strides = [1, 1]} : vector<1x512xf32> to vector<1x128xf32>
    %169 = math.tanh %168 : vector<1x128xf32>
    %170 = vector.extract_strided_slice %167 {offsets = [0, 0], sizes = [1, 128], strides = [1, 1]} : vector<1x384xf32> to vector<1x128xf32>
    %171 = vector.extract_strided_slice %167 {offsets = [0, 128], sizes = [1, 128], strides = [1, 1]} : vector<1x384xf32> to vector<1x128xf32>
    %172 = vector.extract_strided_slice %167 {offsets = [0, 256], sizes = [1, 128], strides = [1, 1]} : vector<1x384xf32> to vector<1x128xf32>
    %173 = arith.mulf %171, %154 : vector<1x128xf32>
    %174 = arith.mulf %170, %169 : vector<1x128xf32>
    %175 = arith.addf %173, %174 : vector<1x128xf32>
    %176 = math.tanh %175 : vector<1x128xf32>
    %177 = arith.mulf %172, %176 : vector<1x128xf32>
    %c7_63 = arith.constant 7 : index
    %c0_64 = arith.constant 0 : index
    %178 = vector.load %arg8[%c7_63, %c0_64] : memref<8x128xf32, #tpu.memory_space<vmem>>, vector<1x128xf32>
    tpu.vector_store %arg8[%c7_63, %c0_64], %177 {strides = array<i32>} : memref<8x128xf32, #tpu.memory_space<vmem>>, vector<1x128xf32>,
    %c0_65 = arith.constant 0 : index
    %c0_66 = arith.constant 0 : index
    %179 = vector.load %arg8[%c0_65, %c0_66] : memref<8x128xf32, #tpu.memory_space<vmem>>, vector<8x128xf32>
    %c0_67 = arith.constant 0 : index
    %c0_68 = arith.constant 0 : index
    %180 = vector.load %arg4[%c0_67, %c0_68] : memref<128x128xf32, #tpu.memory_space<vmem>>, vector<128x128xf32>
    %cst_69 = arith.constant dense<0.000000e+00> : vector<8x128xf32>
    %181 = tpu.matmul %179, %180, %cst_69 {dimension_numbers = #tpu.dot_dimension_numbers<[1], [0], [0], [1], [0, 0, 1, 1], [], []>} : vector<8x128xf32>, vector<128x128xf32>, vector<8x128xf32> -> vector<8x128xf32>
    %c0_70 = arith.constant 0 : index
    %c0_71 = arith.constant 0 : index
    %182 = vector.load %arg5[%c0_70, %c0_71] : memref<1x128xf32, #tpu.memory_space<vmem>>, vector<1x128xf32>
    %183 = vector.broadcast %182 : vector<1x128xf32> to vector<8x128xf32>
    %184 = arith.addf %181, %183 : vector<8x128xf32>
    %c0_72 = arith.constant 0 : index
    %c0_73 = arith.constant 0 : index
    %185 = vector.load %arg6[%c0_72, %c0_73] : memref<8x128xf32, #tpu.memory_space<vmem>>, vector<8x128xf32>
    tpu.vector_store %arg6[%c0_72, %c0_73], %184 {strides = array<i32>} : memref<8x128xf32, #tpu.memory_space<vmem>>, vector<8x128xf32>,
    return
  }
}

</mosaic_0001>

<llo_original>
// kernel: forward.1
$region0: #{forward.1}
  #allocation0 [shape = 'u32[]', space=smem, size = 0x4, offset = 0x4, fixed_abs, tag = 'smem constant byte address 0x4 - core index']
  #allocation1 [shape = 'u32[144,128]{1,0:T(1,128)}', space=vmem, size = 0x12000, scoped, tag = 'internal scratch']
  #allocation2 [shape = 'f32[8,512]{1,0:T(8,128)}', space=vmem, size = 0x4000, scoped, tag = 'scratch operand']
  #allocation3 [shape = 'f32[8,128]{1,0:T(8,128)}', space=vmem, size = 0x1000, scoped, tag = 'scratch operand']
  %s0 = inlined_call_operand.vmem [shape: f32[8,1], index: 0, kind: input, shape index: {}]
  %s1 = inlined_call_operand.vmem [shape: f32[1,512], index: 1, kind: input, shape index: {}]
  %s2 = inlined_call_operand.vmem [shape: f32[1,512], index: 2, kind: input, shape index: {}]
  %s3 = inlined_call_operand.hbm [shape: f32[128,512], index: 3, kind: input, shape index: {}]
  %s4 = inlined_call_operand.hbm [shape: f32[128,128], index: 4, kind: input, shape index: {}]
  %s5 = inlined_call_operand.vmem [shape: f32[1,128], index: 5, kind: input, shape index: {}]
  %s6 = inlined_call_operand.vmem [shape: f32[8,128], index: 6, kind: output, shape index: {}]
  %s7 = sld [smem:[#allocation0]]
  $region42: #{forward.1} parent=0
    _
  %s9 = ssub.s32 1, %s7
  %s10 = scalar_select 0, %s9, %s7
  $region1: #{forward.1} parent=0
    #allocation4 [shape = 'u8[262144]{0}', space=vmem, size = 0x40000, scoped, tag = 'input window, operand 3, single buffered']
    #allocation5 [shape = 's32[1]{0}', space=sflag, size = 0x4, scoped, tag = 'scoped memory for forward.1']
    #allocation6 [shape = 'u8[65536]{0}', space=vmem, size = 0x10000, scoped, tag = 'input window, operand 4, single buffered']
    #allocation7 [shape = 's32[1]{0}', space=sflag, size = 0x4, scoped, tag = 'scoped memory for forward.1']
    %11 = vsyncpa [#allocation5], 0
    %12 = vsyncpa [#allocation7], 0
    // Predicated region
    $region2: #{forward.1} parent=1 // pred_check
      _
    $region3: #{forward.1} parent=1 // pred_check_branch
      %14 = sbr.rel (0) target = $region5
    $region4: #{forward.1} parent=1 // pred_region
      _
    $region5: #{forward.1} parent=1 // pred_fallthru
      _
    // Predicated region
    $region6: #{forward.1} parent=1 // pred_check
      _
    $region7: #{forward.1} parent=1 // pred_check_branch
      %16 = sbr.rel (0) target = $region9
    $region8: #{forward.1} parent=1 // pred_region
      _
    $region9: #{forward.1} parent=1 // pred_fallthru
      _
    // Predicated region
    $region10: #{forward.1} parent=1 // pred_check
      _
    $region11: #{forward.1} parent=1 // pred_check_branch
      %18 = sbr.rel (0) target = $region13
    $region12: #{forward.1} parent=1 // pred_region
      _
    $region13: #{forward.1} parent=1 // pred_fallthru
      _
    // Predicated region
    $region14: #{forward.1} parent=1 // pred_check
      _
    $region15: #{forward.1} parent=1 // pred_check_branch
      %20 = sbr.rel (0) target = $region17
    $region16: #{forward.1} parent=1 // pred_region
      %s22 = ssub.s32 8192, 8192
      %23 = vsyncadd [#allocation5], %s22
      %s24 = sshll.u32 [#allocation4], 4
      %s25 = int_to_ptr.vmem [resolvable:$true] %s24
      %30 = dma.hbm_to_vmem [thread:$0]  %s3, 8192, %s25, [#allocation5], 512, 512, 32
    $region17: #{forward.1} parent=1 // pred_fallthru
      _
    // Predicated region
    $region18: #{forward.1} parent=1 // pred_check
      _
    $region19: #{forward.1} parent=1 // pred_check_branch
      %32 = sbr.rel (0) target = $region21
    $region20: #{forward.1} parent=1 // pred_region
      %s34 = ssub.s32 2048, 2048
      %35 = vsyncadd [#allocation7], %s34
      %s36 = sshll.u32 [#allocation6], 4
      %s37 = int_to_ptr.vmem [resolvable:$true] %s36
      %42 = dma.hbm_to_vmem [thread:$0]  %s4, 2048, %s37, [#allocation7], 128, 128, 8
    $region21: #{forward.1} parent=1 // pred_fallthru
      _
    // Predicated region
    $region22: #{forward.1} parent=1 // pred_check
      _
    $region23: #{forward.1} parent=1 // pred_check_branch
      %44 = sbr.rel (0) target = $region25
    $region24: #{forward.1} parent=1 // pred_region
      _
    $region25: #{forward.1} parent=1 // pred_fallthru
      _
    // Predicated region
    $region26: #{forward.1} parent=1 // pred_check
      _
    $region27: #{forward.1} parent=1 // pred_check_branch
      %46 = sbr.rel (0) target = $region29
    $region28: #{forward.1} parent=1 // pred_region
      %47 = dma.done [#allocation5], 8192
    $region29: #{forward.1} parent=1 // pred_fallthru
      _
    // Predicated region
    $region30: #{forward.1} parent=1 // pred_check
      _
    $region31: #{forward.1} parent=1 // pred_check_branch
      %49 = sbr.rel (0) target = $region33
    $region32: #{forward.1} parent=1 // pred_region
      %50 = dma.done [#allocation7], 2048
    $region33: #{forward.1} parent=1 // pred_fallthru
      _
    %v51 = vld [vmem:[%s0] sm:$0xff]
    %v52 = vld [vmem:[%s1] sm:$0xf]
    %54 = vset.pattern.permute.xlu0 0
    %55 = vperm.xlu0 %54, %v51
    %v56 = vpop.permute.xlu0 %55
    %v59 = vlaneseq
    %v60 = vshrl.u32 %v59, 7
    %v61 = vsub.s32 0, %v60
    %v62 = vrot.slane %v52, %v61
    %v63 = vlaneseq
    %v64 = vshrl.u32 %v63, 7
    %v65 = vsub.s32 1, %v64
    %v66 = vrot.slane %v52, %v65
    %v67 = vlaneseq
    %v68 = vshrl.u32 %v67, 7
    %v69 = vsub.s32 2, %v68
    %v70 = vrot.slane %v52, %v69
    %v71 = vlaneseq
    %v72 = vshrl.u32 %v71, 7
    %v73 = vsub.s32 3, %v72
    %v74 = vrot.slane %v52, %v73
    %v79 = vmul.f32 %v56, %v62
    %v80 = vmul.f32 %v56, %v66
    %v81 = vmul.f32 %v56, %v70
    %v82 = vmul.f32 %v56, %v74
    %v83 = vld [vmem:[%s2] sm:$0xf]
    %v85 = vlaneseq
    %v86 = vshrl.u32 %v85, 7
    %v87 = vsub.s32 0, %v86
    %v88 = vrot.slane %v83, %v87
    %v89 = vlaneseq
    %v90 = vshrl.u32 %v89, 7
    %v91 = vsub.s32 1, %v90
    %v92 = vrot.slane %v83, %v91
    %v93 = vlaneseq
    %v94 = vshrl.u32 %v93, 7
    %v95 = vsub.s32 2, %v94
    %v96 = vrot.slane %v83, %v95
    %v97 = vlaneseq
    %v98 = vshrl.u32 %v97, 7
    %v99 = vsub.s32 3, %v98
    %v100 = vrot.slane %v83, %v99
    %v105 = vadd.f32 %v79, %v88
    %v106 = vadd.f32 %v80, %v92
    %v107 = vadd.f32 %v81, %v96
    %v108 = vadd.f32 %v82, %v100
    %109 = vst [vmem:[#allocation2] sm:$0xff] %v105
    %110 = vst [vmem:[#allocation2 + $0x8] sm:$0xff] %v106
    %111 = vst [vmem:[#allocation2 + $0x10] sm:$0xff] %v107
    %112 = vst [vmem:[#allocation2 + $0x18] sm:$0xff] %v108
    %v113 = vld [vmem:[#allocation2] ss:$8 sm:$0xf]
    %v114 = vld [vmem:[#allocation4] sm:$0xff]
    %v115 = vld [vmem:[#allocation4 + $0x8] sm:$0xff]
    %v116 = vld [vmem:[#allocation4 + $0x10] sm:$0xff]
    %v117 = vld [vmem:[#allocation4 + $0x18] sm:$0xff]
    %v118 = vld [vmem:[#allocation4 + $0x20] sm:$0xff]
    %v119 = vld [vmem:[#allocation4 + $0x28] sm:$0xff]
    %v120 = vld [vmem:[#allocation4 + $0x30] sm:$0xff]
    %v121 = vld [vmem:[#allocation4 + $0x38] sm:$0xff]
    %v122 = vld [vmem:[#allocation4 + $0x40] sm:$0xff]
    %v123 = vld [vmem:[#allocation4 + $0x48] sm:$0xff]
    %v124 = vld [vmem:[#allocation4 + $0x50] sm:$0xff]
    %v125 = vld [vmem:[#allocation4 + $0x58] sm:$0xff]
    %v126 = vld [vmem:[#allocation4 + $0x60] sm:$0xff]
    %v127 = vld [vmem:[#allocation4 + $0x68] sm:$0xff]
    %v128 = vld [vmem:[#allocation4 + $0x70] sm:$0xff]
    %v129 = vld [vmem:[#allocation4 + $0x78] sm:$0xff]
    %v130 = vld [vmem:[#allocation4 + $0x80] sm:$0xff]
    %v131 = vld [vmem:[#allocation4 + $0x88] sm:$0xff]
    %v132 = vld [vmem:[#allocation4 + $0x90] sm:$0xff]
    %v133 = vld [vmem:[#allocation4 + $0x98] sm:$0xff]
    %v134 = vld [vmem:[#allocation4 + $0xa0] sm:$0xff]
    %v135 = vld [vmem:[#allocation4 + $0xa8] sm:$0xff]
    %v136 = vld [vmem:[#allocation4 + $0xb0] sm:$0xff]
    %v137 = vld [vmem:[#allocation4 + $0xb8] sm:$0xff]
    %v138 = vld [vmem:[#allocation4 + $0xc0] sm:$0xff]
    %v139 = vld [vmem:[#allocation4 + $0xc8] sm:$0xff]
    %v140 = vld [vmem:[#allocation4 + $0xd0] sm:$0xff]
    %v141 = vld [vmem:[#allocation4 + $0xd8] sm:$0xff]
    %v142 = vld [vmem:[#allocation4 + $0xe0] sm:$0xff]
    %v143 = vld [vmem:[#allocation4 + $0xe8] sm:$0xff]
    %v144 = vld [vmem:[#allocation4 + $0xf0] sm:$0xff]
    %v145 = vld [vmem:[#allocation4 + $0xf8] sm:$0xff]
    %v146 = vld [vmem:[#allocation4 + $0x100] sm:$0xff]
    %v147 = vld [vmem:[#allocation4 + $0x108] sm:$0xff]
    %v148 = vld [vmem:[#allocation4 + $0x110] sm:$0xff]
    %v149 = vld [vmem:[#allocation4 + $0x118] sm:$0xff]
    %v150 = vld [vmem:[#allocation4 + $0x120] sm:$0xff]
    %v151 = vld [vmem:[#allocation4 + $0x128] sm:$0xff]
    %v152 = vld [vmem:[#allocation4 + $0x130] sm:$0xff]
    %v153 = vld [vmem:[#allocation4 + $0x138] sm:$0xff]
    %v154 = vld [vmem:[#allocation4 + $0x140] sm:$0xff]
    %v155 = vld [vmem:[#allocation4 + $0x148] sm:$0xff]
    %v156 = vld [vmem:[#allocation4 + $0x150] sm:$0xff]
    %v157 = vld [vmem:[#allocation4 + $0x158] sm:$0xff]
    %v158 = vld [vmem:[#allocation4 + $0x160] sm:$0xff]
    %v159 = vld [vmem:[#allocation4 + $0x168] sm:$0xff]
    %v160 = vld [vmem:[#allocation4 + $0x170] sm:$0xff]
    %v161 = vld [vmem:[#allocation4 + $0x178] sm:$0xff]
    %v162 = vld [vmem:[#allocation4 + $0x180] sm:$0xff]
    %v163 = vld [vmem:[#allocation4 + $0x188] sm:$0xff]
    %v164 = vld [vmem:[#allocation4 + $0x190] sm:$0xff]
    %v165 = vld [vmem:[#allocation4 + $0x198] sm:$0xff]
    %v166 = vld [vmem:[#allocation4 + $0x1a0] sm:$0xff]
    %v167 = vld [vmem:[#allocation4 + $0x1a8] sm:$0xff]
    %v168 = vld [vmem:[#allocation4 + $0x1b0] sm:$0xff]
    %v169 = vld [vmem:[#allocation4 + $0x1b8] sm:$0xff]
    %v170 = vld [vmem:[#allocation4 + $0x1c0] sm:$0xff]
    %v171 = vld [vmem:[#allocation4 + $0x1c8] sm:$0xff]
    %v172 = vld [vmem:[#allocation4 + $0x1d0] sm:$0xff]
    %v173 = vld [vmem:[#allocation4 + $0x1d8] sm:$0xff]
    %v174 = vld [vmem:[#allocation4 + $0x1e0] sm:$0xff]
    %v175 = vld [vmem:[#allocation4 + $0x1e8] sm:$0xff]
    %v176 = vld [vmem:[#allocation4 + $0x1f0] sm:$0xff]
    %v177 = vld [vmem:[#allocation4 + $0x1f8] sm:$0xff]
    %178 = vmatprep.subr.mxu0 %v115
    %179 = vmatpush1.msra.mxu0 %v114
    %180 = vmatprep.subr.mxu0 %v119
    %181 = vmatpush1.msra.mxu0 %v118
    %182 = vmatprep.subr.mxu0 %v123
    %183 = vmatpush1.msra.mxu0 %v122
    %184 = vmatprep.subr.mxu0 %v127
    %185 = vmatpush1.msra.mxu0 %v126
    %186 = vmatprep.subr.mxu0 %v131
    %187 = vmatpush1.msra.mxu0 %v130
    %188 = vmatprep.subr.mxu0 %v135
    %189 = vmatpush1.msra.mxu0 %v134
    %190 = vmatprep.subr.mxu0 %v139
    %191 = vmatpush1.msra.mxu0 %v138
    %192 = vmatprep.subr.mxu0 %v143
    %193 = vmatpush1.msra.mxu0 %v142
    %194 = vmatprep.subr.mxu0 %v147
    %195 = vmatpush1.msra.mxu0 %v146
    %196 = vmatprep.subr.mxu0 %v151
    %197 = vmatpush1.msra.mxu0 %v150
    %198 = vmatprep.subr.mxu0 %v155
    %199 = vmatpush1.msra.mxu0 %v154
    %200 = vmatprep.subr.mxu0 %v159
    %201 = vmatpush1.msra.mxu0 %v158
    %202 = vmatprep.subr.mxu0 %v163
    %203 = vmatpush1.msra.mxu0 %v162
    %204 = vmatprep.subr.mxu0 %v167
    %205 = vmatpush1.msra.mxu0 %v166
    %206 = vmatprep.subr.mxu0 %v171
    %207 = vmatpush1.msra.mxu0 %v170
    %208 = vmatprep.subr.mxu0 %v175
    %209 = vmatpush1.msra.mxu0 %v174
    %210 = vmatprep.subr.mxu0 0.0
    %211 = vmatpush1.msra.mxu0 0.0
    %212 = vmatprep.subr.mxu0 0.0
    %213 = vmatpush1.msra.mxu0 0.0
    %214 = vmatprep.subr.mxu0 0.0
    %215 = vmatpush1.msra.mxu0 0.0
    %216 = vmatprep.subr.mxu0 0.0
    %217 = vmatpush1.msra.mxu0 0.0
    %218 = vmatprep.subr.mxu0 0.0
    %219 = vmatpush1.msra.mxu0 0.0
    %220 = vmatprep.subr.mxu0 0.0
    %221 = vmatpush1.msra.mxu0 0.0
    %222 = vmatprep.subr.mxu0 0.0
    %223 = vmatpush1.msra.mxu0 0.0
    %224 = vmatprep.subr.mxu0 0.0
    %225 = vmatpush1.msra.mxu0 0.0
    %226 = vmatprep.subr.mxu0 0.0
    %227 = vmatpush1.msra.mxu0 0.0
    %228 = vmatprep.subr.mxu0 0.0
    %229 = vmatpush1.msra.mxu0 0.0
    %230 = vmatprep.subr.mxu0 0.0
    %231 = vmatpush1.msra.mxu0 0.0
    %232 = vmatprep.subr.mxu0 0.0
    %233 = vmatpush1.msra.mxu0 0.0
    %234 = vmatprep.subr.mxu0 0.0
    %235 = vmatpush1.msra.mxu0 0.0
    %236 = vmatprep.subr.mxu0 0.0
    %237 = vmatpush1.msra.mxu0 0.0
    %238 = vmatprep.subr.mxu0 0.0
    %239 = vmatpush1.msra.mxu0 0.0
    %240 = vmatprep.subr.mxu0 0.0
    %241 = vmatpush1.msra.mxu0 0.0
    %242 = vmatprep.mubr.f32.mxu0 0.0
    %243 = vmatmul.mubr.f32.gmra.mrb[0].mxu0 0.0
    %v244 = vpop.f32.mrb[0].mxu0
    %v245 = vadd.f32 0.0, %v244
    %v246 = vpop.f32.mrb[0].mxu0
    %v247 = vadd.f32 0.0, %v246
    %248 = vdwg.mxu0
    %249 = vmatprep.subr.mxu0 %v117
    %250 = vmatpush1.msra.mxu0 %v116
    %251 = vmatprep.subr.mxu0 %v121
    %252 = vmatpush1.msra.mxu0 %v120
    %253 = vmatprep.subr.mxu0 %v125
    %254 = vmatpush1.msra.mxu0 %v124
    %255 = vmatprep.subr.mxu0 %v129
    %256 = vmatpush1.msra.mxu0 %v128
    %257 = vmatprep.subr.mxu0 %v133
    %258 = vmatpush1.msra.mxu0 %v132
    %259 = vmatprep.subr.mxu0 %v137
    %260 = vmatpush1.msra.mxu0 %v136
    %261 = vmatprep.subr.mxu0 %v141
    %262 = vmatpush1.msra.mxu0 %v140
    %263 = vmatprep.subr.mxu0 %v145
    %264 = vmatpush1.msra.mxu0 %v144
    %265 = vmatprep.subr.mxu0 %v149
    %266 = vmatpush1.msra.mxu0 %v148
    %267 = vmatprep.subr.mxu0 %v153
    %268 = vmatpush1.msra.mxu0 %v152
    %269 = vmatprep.subr.mxu0 %v157
    %270 = vmatpush1.msra.mxu0 %v156
    %271 = vmatprep.subr.mxu0 %v161
    %272 = vmatpush1.msra.mxu0 %v160
    %273 = vmatprep.subr.mxu0 %v165
    %274 = vmatpush1.msra.mxu0 %v164
    %275 = vmatprep.subr.mxu0 %v169
    %276 = vmatpush1.msra.mxu0 %v168
    %277 = vmatprep.subr.mxu0 %v173
    %278 = vmatpush1.msra.mxu0 %v172
    %279 = vmatprep.subr.mxu0 %v177
    %280 = vmatpush1.msra.mxu0 %v176
    %281 = vmatprep.subr.mxu0 0.0
    %282 = vmatpush1.msra.mxu0 0.0
    %283 = vmatprep.subr.mxu0 0.0
    %284 = vmatpush1.msra.mxu0 0.0
    %285 = vmatprep.subr.mxu0 0.0
    %286 = vmatpush1.msra.mxu0 0.0
    %287 = vmatprep.subr.mxu0 0.0
    %288 = vmatpush1.msra.mxu0 0.0
    %289 = vmatprep.subr.mxu0 0.0
    %290 = vmatpush1.msra.mxu0 0.0
    %291 = vmatprep.subr.mxu0 0.0
    %292 = vmatpush1.msra.mxu0 0.0
    %293 = vmatprep.subr.mxu0 0.0
    %294 = vmatpush1.msra.mxu0 0.0
    %295 = vmatprep.subr.mxu0 0.0
    %296 = vmatpush1.msra.mxu0 0.0
    %297 = vmatprep.subr.mxu0 0.0
    %298 = vmatpush1.msra.mxu0 0.0
    %299 = vmatprep.subr.mxu0 0.0
    %300 = vmatpush1.msra.mxu0 0.0
    %301 = vmatprep.subr.mxu0 0.0
    %302 = vmatpush1.msra.mxu0 0.0
    %303 = vmatprep.subr.mxu0 0.0
    %304 = vmatpush1.msra.mxu0 0.0
    %305 = vmatprep.subr.mxu0 0.0
    %306 = vmatpush1.msra.mxu0 0.0
    %307 = vmatprep.subr.mxu0 0.0
    %308 = vmatpush1.msra.mxu0 0.0
    %309 = vmatprep.subr.mxu0 0.0
    %310 = vmatpush1.msra.mxu0 0.0
    %311 = vmatprep.subr.mxu0 0.0
    %312 = vmatpush1.msra.mxu0 0.0
    %313 = vmatprep.mubr.f32.mxu0 0.0
    %314 = vmatmul.mubr.f32.gmra.mrb[0].mxu0 0.0
    %v315 = vpop.f32.mrb[0].mxu0
    %v316 = vadd.f32 0.0, %v315
    %v317 = vpop.f32.mrb[0].mxu0
    %v318 = vadd.f32 0.0, %v317
    %319 = vdwg.mxu0
    %v324 = vcombine.low %v245, %v247
    %v325 = vcombine.low %v316, %v318
    %v327 = vunpack.c.l.s4 1966171168
    %v328 = vunpack.c.0.s8 %v327
    %v329 = vlaneseq
    %v330 = vshrl.u32 %v329, 7
    %v331 = vsub.s32 %v328, %v330
    %v332 = vrot.slane %v324, %v331
    %v334 = vunpack.c.l.s4 1966171168
    %v335 = vunpack.c.0.s8 %v334
    %v336 = vlaneseq
    %v337 = vshrl.u32 %v336, 7
    %v338 = vsub.s32 %v335, %v337
    %v339 = vrot.slane %v325, %v338
    %v340 = vcombine.low %v332, %v339
    %v342 = vunpack.c.l.s4 1966171168
    %v343 = vunpack.c.0.s8 %v342
    %v344 = vlaneseq
    %v345 = vshrl.u32 %v344, 7
    %v346 = vsub.s32 %v343, %v345
    %v347 = vrot.slane %v340, %v346
    %v349 = vadd.f32 %v113, %v347
    %v350 = vxor.u32 %v349, 2147483648
    %v351 = vmul.f32 %v350, 1.442695
    %v352 = vpow.pop %v351
    %v353 = vadd.f32 %v352, 1.0
    %v354 = vrcp.pop %v353
    %v355 = vmul.f32 1.0, %v354
    %v357 = vrot.slane %v349, 3
    %v359 = vtanh.pop %v357
    %v361 = vrot.slane %v355, 1
    %v363 = vmul.f32 %v361, 0.0
    %v364 = vmul.f32 %v355, %v359
    %v365 = vadd.f32 %v363, %v364
    %v366 = vtanh.pop %v365
    %v367 = vrot.slane %v355, 2
    %v369 = vmul.f32 %v367, %v366
    %370 = vst [vmem:[#allocation3] sm:$0x1] %v369
    %s371 = scalar_lea.vmem [#allocation2], 1
    %v372 = vld [vmem:[%s371] ss:$8 sm:$0xf]
    %v373 = vld [vmem:[#allocation4] sm:$0xff]
    %v374 = vld [vmem:[#allocation4 + $0x8] sm:$0xff]
    %v375 = vld [vmem:[#allocation4 + $0x10] sm:$0xff]
    %v376 = vld [vmem:[#allocation4 + $0x18] sm:$0xff]
    %v377 = vld [vmem:[#allocation4 + $0x20] sm:$0xff]
    %v378 = vld [vmem:[#allocation4 + $0x28] sm:$0xff]
    %v379 = vld [vmem:[#allocation4 + $0x30] sm:$0xff]
    %v380 = vld [vmem:[#allocation4 + $0x38] sm:$0xff]
    %v381 = vld [vmem:[#allocation4 + $0x40] sm:$0xff]
    %v382 = vld [vmem:[#allocation4 + $0x48] sm:$0xff]
    %v383 = vld [vmem:[#allocation4 + $0x50] sm:$0xff]
    %v384 = vld [vmem:[#allocation4 + $0x58] sm:$0xff]
    %v385 = vld [vmem:[#allocation4 + $0x60] sm:$0xff]
    %v386 = vld [vmem:[#allocation4 + $0x68] sm:$0xff]
    %v387 = vld [vmem:[#allocation4 + $0x70] sm:$0xff]
    %v388 = vld [vmem:[#allocation4 + $0x78] sm:$0xff]
    %v389 = vld [vmem:[#allocation4 + $0x80] sm:$0xff]
    %v390 = vld [vmem:[#allocation4 + $0x88] sm:$0xff]
    %v391 = vld [vmem:[#allocation4 + $0x90] sm:$0xff]
    %v392 = vld [vmem:[#allocation4 + $0x98] sm:$0xff]
    %v393 = vld [vmem:[#allocation4 + $0xa0] sm:$0xff]
    %v394 = vld [vmem:[#allocation4 + $0xa8] sm:$0xff]
    %v395 = vld [vmem:[#allocation4 + $0xb0] sm:$0xff]
    %v396 = vld [vmem:[#allocation4 + $0xb8] sm:$0xff]
    %v397 = vld [vmem:[#allocation4 + $0xc0] sm:$0xff]
    %v398 = vld [vmem:[#allocation4 + $0xc8] sm:$0xff]
    %v399 = vld [vmem:[#allocation4 + $0xd0] sm:$0xff]
    %v400 = vld [vmem:[#allocation4 + $0xd8] sm:$0xff]
    %v401 = vld [vmem:[#allocation4 + $0xe0] sm:$0xff]
    %v402 = vld [vmem:[#allocation4 + $0xe8] sm:$0xff]
    %v403 = vld [vmem:[#allocation4 + $0xf0] sm:$0xff]
    %v404 = vld [vmem:[#allocation4 + $0xf8] sm:$0xff]
    %v405 = vld [vmem:[#allocation4 + $0x100] sm:$0xff]
    %v406 = vld [vmem:[#allocation4 + $0x108] sm:$0xff]
    %v407 = vld [vmem:[#allocation4 + $0x110] sm:$0xff]
    %v408 = vld [vmem:[#allocation4 + $0x118] sm:$0xff]
    %v409 = vld [vmem:[#allocation4 + $0x120] sm:$0xff]
    %v410 = vld [vmem:[#allocation4 + $0x128] sm:$0xff]
    %v411 = vld [vmem:[#allocation4 + $0x130] sm:$0xff]
    %v412 = vld [vmem:[#allocation4 + $0x138] sm:$0xff]
    %v413 = vld [vmem:[#allocation4 + $0x140] sm:$0xff]
    %v414 = vld [vmem:[#allocation4 + $0x148] sm:$0xff]
    %v415 = vld [vmem:[#allocation4 + $0x150] sm:$0xff]
    %v416 = vld [vmem:[#allocation4 + $0x158] sm:$0xff]
    %v417 = vld [vmem:[#allocation4 + $0x160] sm:$0xff]
    %v418 = vld [vmem:[#allocation4 + $0x168] sm:$0xff]
    %v419 = vld [vmem:[#allocation4 + $0x170] sm:$0xff]
    %v420 = vld [vmem:[#allocation4 + $0x178] sm:$0xff]
    %v421 = vld [vmem:[#allocation4 + $0x180] sm:$0xff]
    %v422 = vld [vmem:[#allocation4 + $0x188] sm:$0xff]
    %v423 = vld [vmem:[#allocation4 + $0x190] sm:$0xff]
    %v424 = vld [vmem:[#allocation4 + $0x198] sm:$0xff]
    %v425 = vld [vmem:[#allocation4 + $0x1a0] sm:$0xff]
    %v426 = vld [vmem:[#allocation4 + $0x1a8] sm:$0xff]
    %v427 = vld [vmem:[#allocation4 + $0x1b0] sm:$0xff]
    %v428 = vld [vmem:[#allocation4 + $0x1b8] sm:$0xff]
    %v429 = vld [vmem:[#allocation4 + $0x1c0] sm:$0xff]
    %v430 = vld [vmem:[#allocation4 + $0x1c8] sm:$0xff]
    %v431 = vld [vmem:[#allocation4 + $0x1d0] sm:$0xff]
    %v432 = vld [vmem:[#allocation4 + $0x1d8] sm:$0xff]
    %v433 = vld [vmem:[#allocation4 + $0x1e0] sm:$0xff]
    %v434 = vld [vmem:[#allocation4 + $0x1e8] sm:$0xff]
    %v435 = vld [vmem:[#allocation4 + $0x1f0] sm:$0xff]
    %v436 = vld [vmem:[#allocation4 + $0x1f8] sm:$0xff]
    %437 = vmatprep.subr.mxu0 %v374
    %438 = vmatpush1.msra.mxu0 %v373
    %439 = vmatprep.subr.mxu0 %v378
    %440 = vmatpush1.msra.mxu0 %v377
    %441 = vmatprep.subr.mxu0 %v382
    %442 = vmatpush1.msra.mxu0 %v381
    %443 = vmatprep.subr.mxu0 %v386
    %444 = vmatpush1.msra.mxu0 %v385
    %445 = vmatprep.subr.mxu0 %v390
    %446 = vmatpush1.msra.mxu0 %v389
    %447 = vmatprep.subr.mxu0 %v394
    %448 = vmatpush1.msra.mxu0 %v393
    %449 = vmatprep.subr.mxu0 %v398
    %450 = vmatpush1.msra.mxu0 %v397
    %451 = vmatprep.subr.mxu0 %v402
    %452 = vmatpush1.msra.mxu0 %v401
    %453 = vmatprep.subr.mxu0 %v406
    %454 = vmatpush1.msra.mxu0 %v405
    %455 = vmatprep.subr.mxu0 %v410
    %456 = vmatpush1.msra.mxu0 %v409
    %457 = vmatprep.subr.mxu0 %v414
    %458 = vmatpush1.msra.mxu0 %v413
    %459 = vmatprep.subr.mxu0 %v418
    %460 = vmatpush1.msra.mxu0 %v417
    %461 = vmatprep.subr.mxu0 %v422
    %462 = vmatpush1.msra.mxu0 %v421
    %463 = vmatprep.subr.mxu0 %v426
    %464 = vmatpush1.msra.mxu0 %v425
    %465 = vmatprep.subr.mxu0 %v430
    %466 = vmatpush1.msra.mxu0 %v429
    %467 = vmatprep.subr.mxu0 %v434
    %468 = vmatpush1.msra.mxu0 %v433
    %469 = vmatprep.subr.mxu0 0.0
    %470 = vmatpush1.msra.mxu0 0.0
    %471 = vmatprep.subr.mxu0 0.0
    %472 = vmatpush1.msra.mxu0 0.0
    %473 = vmatprep.subr.mxu0 0.0
    %474 = vmatpush1.msra.mxu0 0.0
    %475 = vmatprep.subr.mxu0 0.0
    %476 = vmatpush1.msra.mxu0 0.0
    %477 = vmatprep.subr.mxu0 0.0
    %478 = vmatpush1.msra.mxu0 0.0
    %479 = vmatprep.subr.mxu0 0.0
    %480 = vmatpush1.msra.mxu0 0.0
    %481 = vmatprep.subr.mxu0 0.0
    %482 = vmatpush1.msra.mxu0 0.0
    %483 = vmatprep.subr.mxu0 0.0
    %484 = vmatpush1.msra.mxu0 0.0
    %485 = vmatprep.subr.mxu0 0.0
    %486 = vmatpush1.msra.mxu0 0.0
    %487 = vmatprep.subr.mxu0 0.0
    %488 = vmatpush1.msra.mxu0 0.0
    %489 = vmatprep.subr.mxu0 0.0
    %490 = vmatpush1.msra.mxu0 0.0
    %491 = vmatprep.subr.mxu0 0.0
    %492 = vmatpush1.msra.mxu0 0.0
    %493 = vmatprep.subr.mxu0 0.0
    %494 = vmatpush1.msra.mxu0 0.0
    %495 = vmatprep.subr.mxu0 0.0
    %496 = vmatpush1.msra.mxu0 0.0
    %497 = vmatprep.subr.mxu0 0.0
    %498 = vmatpush1.msra.mxu0 0.0
    %499 = vmatprep.subr.mxu0 0.0
    %500 = vmatpush1.msra.mxu0 0.0
    %501 = vmatprep.mubr.f32.mxu0 0.0
    %502 = vmatmul.mubr.f32.gmra.mrb[0].mxu0 %v369
    %v503 = vpop.f32.mrb[0].mxu0
    %v504 = vadd.f32 0.0, %v503
    %v505 = vpop.f32.mrb[0].mxu0
    %v506 = vadd.f32 0.0, %v505
    %507 = vdwg.mxu0
    %508 = vmatprep.subr.mxu0 %v376
    %509 = vmatpush1.msra.mxu0 %v375
    %510 = vmatprep.subr.mxu0 %v380
    %511 = vmatpush1.msra.mxu0 %v379
    %512 = vmatprep.subr.mxu0 %v384
    %513 = vmatpush1.msra.mxu0 %v383
    %514 = vmatprep.subr.mxu0 %v388
    %515 = vmatpush1.msra.mxu0 %v387
    %516 = vmatprep.subr.mxu0 %v392
    %517 = vmatpush1.msra.mxu0 %v391
    %518 = vmatprep.subr.mxu0 %v396
    %519 = vmatpush1.msra.mxu0 %v395
    %520 = vmatprep.subr.mxu0 %v400
    %521 = vmatpush1.msra.mxu0 %v399
    %522 = vmatprep.subr.mxu0 %v404
    %523 = vmatpush1.msra.mxu0 %v403
    %524 = vmatprep.subr.mxu0 %v408
    %525 = vmatpush1.msra.mxu0 %v407
    %526 = vmatprep.subr.mxu0 %v412
    %527 = vmatpush1.msra.mxu0 %v411
    %528 = vmatprep.subr.mxu0 %v416
    %529 = vmatpush1.msra.mxu0 %v415
    %530 = vmatprep.subr.mxu0 %v420
    %531 = vmatpush1.msra.mxu0 %v419
    %532 = vmatprep.subr.mxu0 %v424
    %533 = vmatpush1.msra.mxu0 %v423
    %534 = vmatprep.subr.mxu0 %v428
    %535 = vmatpush1.msra.mxu0 %v427
    %536 = vmatprep.subr.mxu0 %v432
    %537 = vmatpush1.msra.mxu0 %v431
    %538 = vmatprep.subr.mxu0 %v436
    %539 = vmatpush1.msra.mxu0 %v435
    %540 = vmatprep.subr.mxu0 0.0
    %541 = vmatpush1.msra.mxu0 0.0
    %542 = vmatprep.subr.mxu0 0.0
    %543 = vmatpush1.msra.mxu0 0.0
    %544 = vmatprep.subr.mxu0 0.0
    %545 = vmatpush1.msra.mxu0 0.0
    %546 = vmatprep.subr.mxu0 0.0
    %547 = vmatpush1.msra.mxu0 0.0
    %548 = vmatprep.subr.mxu0 0.0
    %549 = vmatpush1.msra.mxu0 0.0
    %550 = vmatprep.subr.mxu0 0.0
    %551 = vmatpush1.msra.mxu0 0.0
    %552 = vmatprep.subr.mxu0 0.0
    %553 = vmatpush1.msra.mxu0 0.0
    %554 = vmatprep.subr.mxu0 0.0
    %555 = vmatpush1.msra.mxu0 0.0
    %556 = vmatprep.subr.mxu0 0.0
    %557 = vmatpush1.msra.mxu0 0.0
    %558 = vmatprep.subr.mxu0 0.0
    %559 = vmatpush1.msra.mxu0 0.0
    %560 = vmatprep.subr.mxu0 0.0
    %561 = vmatpush1.msra.mxu0 0.0
    %562 = vmatprep.subr.mxu0 0.0
    %563 = vmatpush1.msra.mxu0 0.0
    %564 = vmatprep.subr.mxu0 0.0
    %565 = vmatpush1.msra.mxu0 0.0
    %566 = vmatprep.subr.mxu0 0.0
    %567 = vmatpush1.msra.mxu0 0.0
    %568 = vmatprep.subr.mxu0 0.0
    %569 = vmatpush1.msra.mxu0 0.0
    %570 = vmatprep.subr.mxu0 0.0
    %571 = vmatpush1.msra.mxu0 0.0
    %572 = vmatprep.mubr.f32.mxu0 0.0
    %573 = vmatmul.mubr.f32.gmra.mrb[0].mxu0 %v369
    %v574 = vpop.f32.mrb[0].mxu0
    %v575 = vadd.f32 0.0, %v574
    %v576 = vpop.f32.mrb[0].mxu0
    %v577 = vadd.f32 0.0, %v576
    %578 = vdwg.mxu0
    %v583 = vcombine.low %v504, %v506
    %v584 = vcombine.low %v575, %v577
    %v586 = vunpack.c.l.s4 1966171168
    %v587 = vunpack.c.0.s8 %v586
    %v588 = vlaneseq
    %v589 = vshrl.u32 %v588, 7
    %v590 = vsub.s32 %v587, %v589
    %v591 = vrot.slane %v583, %v590
    %v593 = vunpack.c.l.s4 1966171168
    %v594 = vunpack.c.0.s8 %v593
    %v595 = vlaneseq
    %v596 = vshrl.u32 %v595, 7
    %v597 = vsub.s32 %v594, %v596
    %v598 = vrot.slane %v584, %v597
    %v599 = vcombine.low %v591, %v598
    %v601 = vunpack.c.l.s4 1966171168
    %v602 = vunpack.c.0.s8 %v601
    %v603 = vlaneseq
    %v604 = vshrl.u32 %v603, 7
    %v605 = vsub.s32 %v602, %v604
    %v606 = vrot.slane %v599, %v605
    %v608 = vadd.f32 %v372, %v606
    %v609 = vxor.u32 %v608, 2147483648
    %v610 = vmul.f32 %v609, 1.442695
    %v611 = vpow.pop %v610
    %v612 = vadd.f32 %v611, 1.0
    %v613 = vrcp.pop %v612
    %v614 = vmul.f32 1.0, %v613
    %v616 = vrot.slane %v608, 3
    %v618 = vtanh.pop %v616
    %v620 = vrot.slane %v614, 1
    %v622 = vmul.f32 %v620, %v365
    %v623 = vmul.f32 %v614, %v618
    %v624 = vadd.f32 %v622, %v623
    %v625 = vtanh.pop %v624
    %v626 = vrot.slane %v614, 2
    %v628 = vmul.f32 %v626, %v625
    %629 = vst [vmem:[#allocation3 + $0x1] sm:$0x1] %v628
    %s630 = scalar_lea.vmem [#allocation2], 2
    %v631 = vld [vmem:[%s630] ss:$8 sm:$0xf]
    %v632 = vld [vmem:[#allocation4] sm:$0xff]
    %v633 = vld [vmem:[#allocation4 + $0x8] sm:$0xff]
    %v634 = vld [vmem:[#allocation4 + $0x10] sm:$0xff]
    %v635 = vld [vmem:[#allocation4 + $0x18] sm:$0xff]
    %v636 = vld [vmem:[#allocation4 + $0x20] sm:$0xff]
    %v637 = vld [vmem:[#allocation4 + $0x28] sm:$0xff]
    %v638 = vld [vmem:[#allocation4 + $0x30] sm:$0xff]
    %v639 = vld [vmem:[#allocation4 + $0x38] sm:$0xff]
    %v640 = vld [vmem:[#allocation4 + $0x40] sm:$0xff]
    %v641 = vld [vmem:[#allocation4 + $0x48] sm:$0xff]
    %v642 = vld [vmem:[#allocation4 + $0x50] sm:$0xff]
    %v643 = vld [vmem:[#allocation4 + $0x58] sm:$0xff]
    %v644 = vld [vmem:[#allocation4 + $0x60] sm:$0xff]
    %v645 = vld [vmem:[#allocation4 + $0x68] sm:$0xff]
    %v646 = vld [vmem:[#allocation4 + $0x70] sm:$0xff]
    %v647 = vld [vmem:[#allocation4 + $0x78] sm:$0xff]
    %v648 = vld [vmem:[#allocation4 + $0x80] sm:$0xff]
    %v649 = vld [vmem:[#allocation4 + $0x88] sm:$0xff]
    %v650 = vld [vmem:[#allocation4 + $0x90] sm:$0xff]
    %v651 = vld [vmem:[#allocation4 + $0x98] sm:$0xff]
    %v652 = vld [vmem:[#allocation4 + $0xa0] sm:$0xff]
    %v653 = vld [vmem:[#allocation4 + $0xa8] sm:$0xff]
    %v654 = vld [vmem:[#allocation4 + $0xb0] sm:$0xff]
    %v655 = vld [vmem:[#allocation4 + $0xb8] sm:$0xff]
    %v656 = vld [vmem:[#allocation4 + $0xc0] sm:$0xff]
    %v657 = vld [vmem:[#allocation4 + $0xc8] sm:$0xff]
    %v658 = vld [vmem:[#allocation4 + $0xd0] sm:$0xff]
    %v659 = vld [vmem:[#allocation4 + $0xd8] sm:$0xff]
    %v660 = vld [vmem:[#allocation4 + $0xe0] sm:$0xff]
    %v661 = vld [vmem:[#allocation4 + $0xe8] sm:$0xff]
    %v662 = vld [vmem:[#allocation4 + $0xf0] sm:$0xff]
    %v663 = vld [vmem:[#allocation4 + $0xf8] sm:$0xff]
    %v664 = vld [vmem:[#allocation4 + $0x100] sm:$0xff]
    %v665 = vld [vmem:[#allocation4 + $0x108] sm:$0xff]
    %v666 = vld [vmem:[#allocation4 + $0x110] sm:$0xff]
    %v667 = vld [vmem:[#allocation4 + $0x118] sm:$0xff]
    %v668 = vld [vmem:[#allocation4 + $0x120] sm:$0xff]
    %v669 = vld [vmem:[#allocation4 + $0x128] sm:$0xff]
    %v670 = vld [vmem:[#allocation4 + $0x130] sm:$0xff]
    %v671 = vld [vmem:[#allocation4 + $0x138] sm:$0xff]
    %v672 = vld [vmem:[#allocation4 + $0x140] sm:$0xff]
    %v673 = vld [vmem:[#allocation4 + $0x148] sm:$0xff]
    %v674 = vld [vmem:[#allocation4 + $0x150] sm:$0xff]
    %v675 = vld [vmem:[#allocation4 + $0x158] sm:$0xff]
    %v676 = vld [vmem:[#allocation4 + $0x160] sm:$0xff]
    %v677 = vld [vmem:[#allocation4 + $0x168] sm:$0xff]
    %v678 = vld [vmem:[#allocation4 + $0x170] sm:$0xff]
    %v679 = vld [vmem:[#allocation4 + $0x178] sm:$0xff]
    %v680 = vld [vmem:[#allocation4 + $0x180] sm:$0xff]
    %v681 = vld [vmem:[#allocation4 + $0x188] sm:$0xff]
    %v682 = vld [vmem:[#allocation4 + $0x190] sm:$0xff]
    %v683 = vld [vmem:[#allocation4 + $0x198] sm:$0xff]
    %v684 = vld [vmem:[#allocation4 + $0x1a0] sm:$0xff]
    %v685 = vld [vmem:[#allocation4 + $0x1a8] sm:$0xff]
    %v686 = vld [vmem:[#allocation4 + $0x1b0] sm:$0xff]
    %v687 = vld [vmem:[#allocation4 + $0x1b8] sm:$0xff]
    %v688 = vld [vmem:[#allocation4 + $0x1c0] sm:$0xff]
    %v689 = vld [vmem:[#allocation4 + $0x1c8] sm:$0xff]
    %v690 = vld [vmem:[#allocation4 + $0x1d0] sm:$0xff]
    %v691 = vld [vmem:[#allocation4 + $0x1d8] sm:$0xff]
    %v692 = vld [vmem:[#allocation4 + $0x1e0] sm:$0xff]
    %v693 = vld [vmem:[#allocation4 + $0x1e8] sm:$0xff]
    %v694 = vld [vmem:[#allocation4 + $0x1f0] sm:$0xff]
    %v695 = vld [vmem:[#allocation4 + $0x1f8] sm:$0xff]
    %696 = vmatprep.subr.mxu0 %v633
    %697 = vmatpush1.msra.mxu0 %v632
    %698 = vmatprep.subr.mxu0 %v637
    %699 = vmatpush1.msra.mxu0 %v636
    %700 = vmatprep.subr.mxu0 %v641
    %701 = vmatpush1.msra.mxu0 %v640
    %702 = vmatprep.subr.mxu0 %v645
    %703 = vmatpush1.msra.mxu0 %v644
    %704 = vmatprep.subr.mxu0 %v649
    %705 = vmatpush1.msra.mxu0 %v648
    %706 = vmatprep.subr.mxu0 %v653
    %707 = vmatpush1.msra.mxu0 %v652
    %708 = vmatprep.subr.mxu0 %v657
    %709 = vmatpush1.msra.mxu0 %v656
    %710 = vmatprep.subr.mxu0 %v661
    %711 = vmatpush1.msra.mxu0 %v660
    %712 = vmatprep.subr.mxu0 %v665
    %713 = vmatpush1.msra.mxu0 %v664
    %714 = vmatprep.subr.mxu0 %v669
    %715 = vmatpush1.msra.mxu0 %v668
    %716 = vmatprep.subr.mxu0 %v673
    %717 = vmatpush1.msra.mxu0 %v672
    %718 = vmatprep.subr.mxu0 %v677
    %719 = vmatpush1.msra.mxu0 %v676
    %720 = vmatprep.subr.mxu0 %v681
    %721 = vmatpush1.msra.mxu0 %v680
    %722 = vmatprep.subr.mxu0 %v685
    %723 = vmatpush1.msra.mxu0 %v684
    %724 = vmatprep.subr.mxu0 %v689
    %725 = vmatpush1.msra.mxu0 %v688
    %726 = vmatprep.subr.mxu0 %v693
    %727 = vmatpush1.msra.mxu0 %v692
    %728 = vmatprep.subr.mxu0 0.0
    %729 = vmatpush1.msra.mxu0 0.0
    %730 = vmatprep.subr.mxu0 0.0
    %731 = vmatpush1.msra.mxu0 0.0
    %732 = vmatprep.subr.mxu0 0.0
    %733 = vmatpush1.msra.mxu0 0.0
    %734 = vmatprep.subr.mxu0 0.0
    %735 = vmatpush1.msra.mxu0 0.0
    %736 = vmatprep.subr.mxu0 0.0
    %737 = vmatpush1.msra.mxu0 0.0
    %738 = vmatprep.subr.mxu0 0.0
    %739 = vmatpush1.msra.mxu0 0.0
    %740 = vmatprep.subr.mxu0 0.0
    %741 = vmatpush1.msra.mxu0 0.0
    %742 = vmatprep.subr.mxu0 0.0
    %743 = vmatpush1.msra.mxu0 0.0
    %744 = vmatprep.subr.mxu0 0.0
    %745 = vmatpush1.msra.mxu0 0.0
    %746 = vmatprep.subr.mxu0 0.0
    %747 = vmatpush1.msra.mxu0 0.0
    %748 = vmatprep.subr.mxu0 0.0
    %749 = vmatpush1.msra.mxu0 0.0
    %750 = vmatprep.subr.mxu0 0.0
    %751 = vmatpush1.msra.mxu0 0.0
    %752 = vmatprep.subr.mxu0 0.0
    %753 = vmatpush1.msra.mxu0 0.0
    %754 = vmatprep.subr.mxu0 0.0
    %755 = vmatpush1.msra.mxu0 0.0
    %756 = vmatprep.subr.mxu0 0.0
    %757 = vmatpush1.msra.mxu0 0.0
    %758 = vmatprep.subr.mxu0 0.0
    %759 = vmatpush1.msra.mxu0 0.0
    %760 = vmatprep.mubr.f32.mxu0 0.0
    %761 = vmatmul.mubr.f32.gmra.mrb[0].mxu0 %v628
    %v762 = vpop.f32.mrb[0].mxu0
    %v763 = vadd.f32 0.0, %v762
    %v764 = vpop.f32.mrb[0].mxu0
    %v765 = vadd.f32 0.0, %v764
    %766 = vdwg.mxu0
    %767 = vmatprep.subr.mxu0 %v635
    %768 = vmatpush1.msra.mxu0 %v634
    %769 = vmatprep.subr.mxu0 %v639
    %770 = vmatpush1.msra.mxu0 %v638
    %771 = vmatprep.subr.mxu0 %v643
    %772 = vmatpush1.msra.mxu0 %v642
    %773 = vmatprep.subr.mxu0 %v647
    %774 = vmatpush1.msra.mxu0 %v646
    %775 = vmatprep.subr.mxu0 %v651
    %776 = vmatpush1.msra.mxu0 %v650
    %777 = vmatprep.subr.mxu0 %v655
    %778 = vmatpush1.msra.mxu0 %v654
    %779 = vmatprep.subr.mxu0 %v659
    %780 = vmatpush1.msra.mxu0 %v658
    %781 = vmatprep.subr.mxu0 %v663
    %782 = vmatpush1.msra.mxu0 %v662
    %783 = vmatprep.subr.mxu0 %v667
    %784 = vmatpush1.msra.mxu0 %v666
    %785 = vmatprep.subr.mxu0 %v671
    %786 = vmatpush1.msra.mxu0 %v670
    %787 = vmatprep.subr.mxu0 %v675
    %788 = vmatpush1.msra.mxu0 %v674
    %789 = vmatprep.subr.mxu0 %v679
    %790 = vmatpush1.msra.mxu0 %v678
    %791 = vmatprep.subr.mxu0 %v683
    %792 = vmatpush1.msra.mxu0 %v682
    %793 = vmatprep.subr.mxu0 %v687
    %794 = vmatpush1.msra.mxu0 %v686
    %795 = vmatprep.subr.mxu0 %v691
    %796 = vmatpush1.msra.mxu0 %v690
    %797 = vmatprep.subr.mxu0 %v695
    %798 = vmatpush1.msra.mxu0 %v694
    %799 = vmatprep.subr.mxu0 0.0
    %800 = vmatpush1.msra.mxu0 0.0
    %801 = vmatprep.subr.mxu0 0.0
    %802 = vmatpush1.msra.mxu0 0.0
    %803 = vmatprep.subr.mxu0 0.0
    %804 = vmatpush1.msra.mxu0 0.0
    %805 = vmatprep.subr.mxu0 0.0
    %806 = vmatpush1.msra.mxu0 0.0
    %807 = vmatprep.subr.mxu0 0.0
    %808 = vmatpush1.msra.mxu0 0.0
    %809 = vmatprep.subr.mxu0 0.0
    %810 = vmatpush1.msra.mxu0 0.0
    %811 = vmatprep.subr.mxu0 0.0
    %812 = vmatpush1.msra.mxu0 0.0
    %813 = vmatprep.subr.mxu0 0.0
    %814 = vmatpush1.msra.mxu0 0.0
    %815 = vmatprep.subr.mxu0 0.0
    %816 = vmatpush1.msra.mxu0 0.0
    %817 = vmatprep.subr.mxu0 0.0
    %818 = vmatpush1.msra.mxu0 0.0
    %819 = vmatprep.subr.mxu0 0.0
    %820 = vmatpush1.msra.mxu0 0.0
    %821 = vmatprep.subr.mxu0 0.0
    %822 = vmatpush1.msra.mxu0 0.0
    %823 = vmatprep.subr.mxu0 0.0
    %824 = vmatpush1.msra.mxu0 0.0
    %825 = vmatprep.subr.mxu0 0.0
    %826 = vmatpush1.msra.mxu0 0.0
    %827 = vmatprep.subr.mxu0 0.0
    %828 = vmatpush1.msra.mxu0 0.0
    %829 = vmatprep.subr.mxu0 0.0
    %830 = vmatpush1.msra.mxu0 0.0
    %831 = vmatprep.mubr.f32.mxu0 0.0
    %832 = vmatmul.mubr.f32.gmra.mrb[0].mxu0 %v628
    %v833 = vpop.f32.mrb[0].mxu0
    %v834 = vadd.f32 0.0, %v833
    %v835 = vpop.f32.mrb[0].mxu0
    %v836 = vadd.f32 0.0, %v835
    %837 = vdwg.mxu0
    %v842 = vcombine.low %v763, %v765
    %v843 = vcombine.low %v834, %v836
    %v845 = vunpack.c.l.s4 1966171168
    %v846 = vunpack.c.0.s8 %v845
    %v847 = vlaneseq
    %v848 = vshrl.u32 %v847, 7
    %v849 = vsub.s32 %v846, %v848
    %v850 = vrot.slane %v842, %v849
    %v852 = vunpack.c.l.s4 1966171168
    %v853 = vunpack.c.0.s8 %v852
    %v854 = vlaneseq
    %v855 = vshrl.u32 %v854, 7
    %v856 = vsub.s32 %v853, %v855
    %v857 = vrot.slane %v843, %v856
    %v858 = vcombine.low %v850, %v857
    %v860 = vunpack.c.l.s4 1966171168
    %v861 = vunpack.c.0.s8 %v860
    %v862 = vlaneseq
    %v863 = vshrl.u32 %v862, 7
    %v864 = vsub.s32 %v861, %v863
    %v865 = vrot.slane %v858, %v864
    %v867 = vadd.f32 %v631, %v865
    %v868 = vxor.u32 %v867, 2147483648
    %v869 = vmul.f32 %v868, 1.442695
    %v870 = vpow.pop %v869
    %v871 = vadd.f32 %v870, 1.0
    %v872 = vrcp.pop %v871
    %v873 = vmul.f32 1.0, %v872
    %v875 = vrot.slane %v867, 3
    %v877 = vtanh.pop %v875
    %v879 = vrot.slane %v873, 1
    %v881 = vmul.f32 %v879, %v624
    %v882 = vmul.f32 %v873, %v877
    %v883 = vadd.f32 %v881, %v882
    %v884 = vtanh.pop %v883
    %v885 = vrot.slane %v873, 2
    %v887 = vmul.f32 %v885, %v884
    %888 = vst [vmem:[#allocation3 + $0x2] sm:$0x1] %v887
    %s889 = scalar_lea.vmem [#allocation2], 3
    %v890 = vld [vmem:[%s889] ss:$8 sm:$0xf]
    %v891 = vld [vmem:[#allocation4] sm:$0xff]
    %v892 = vld [vmem:[#allocation4 + $0x8] sm:$0xff]
    %v893 = vld [vmem:[#allocation4 + $0x10] sm:$0xff]
    %v894 = vld [vmem:[#allocation4 + $0x18] sm:$0xff]
    %v895 = vld [vmem:[#allocation4 + $0x20] sm:$0xff]
    %v896 = vld [vmem:[#allocation4 + $0x28] sm:$0xff]
    %v897 = vld [vmem:[#allocation4 + $0x30] sm:$0xff]
    %v898 = vld [vmem:[#allocation4 + $0x38] sm:$0xff]
    %v899 = vld [vmem:[#allocation4 + $0x40] sm:$0xff]
    %v900 = vld [vmem:[#allocation4 + $0x48] sm:$0xff]
    %v901 = vld [vmem:[#allocation4 + $0x50] sm:$0xff]
    %v902 = vld [vmem:[#allocation4 + $0x58] sm:$0xff]
    %v903 = vld [vmem:[#allocation4 + $0x60] sm:$0xff]
    %v904 = vld [vmem:[#allocation4 + $0x68] sm:$0xff]
    %v905 = vld [vmem:[#allocation4 + $0x70] sm:$0xff]
    %v906 = vld [vmem:[#allocation4 + $0x78] sm:$0xff]
    %v907 = vld [vmem:[#allocation4 + $0x80] sm:$0xff]
    %v908 = vld [vmem:[#allocation4 + $0x88] sm:$0xff]
    %v909 = vld [vmem:[#allocation4 + $0x90] sm:$0xff]
    %v910 = vld [vmem:[#allocation4 + $0x98] sm:$0xff]
    %v911 = vld [vmem:[#allocation4 + $0xa0] sm:$0xff]
    %v912 = vld [vmem:[#allocation4 + $0xa8] sm:$0xff]
    %v913 = vld [vmem:[#allocation4 + $0xb0] sm:$0xff]
    %v914 = vld [vmem:[#allocation4 + $0xb8] sm:$0xff]
    %v915 = vld [vmem:[#allocation4 + $0xc0] sm:$0xff]
    %v916 = vld [vmem:[#allocation4 + $0xc8] sm:$0xff]
    %v917 = vld [vmem:[#allocation4 + $0xd0] sm:$0xff]
    %v918 = vld [vmem:[#allocation4 + $0xd8] sm:$0xff]
    %v919 = vld [vmem:[#allocation4 + $0xe0] sm:$0xff]
    %v920 = vld [vmem:[#allocation4 + $0xe8] sm:$0xff]
    %v921 = vld [vmem:[#allocation4 + $0xf0] sm:$0xff]
    %v922 = vld [vmem:[#allocation4 + $0xf8] sm:$0xff]
    %v923 = vld [vmem:[#allocation4 + $0x100] sm:$0xff]
    %v924 = vld [vmem:[#allocation4 + $0x108] sm:$0xff]
    %v925 = vld [vmem:[#allocation4 + $0x110] sm:$0xff]
    %v926 = vld [vmem:[#allocation4 + $0x118] sm:$0xff]
    %v927 = vld [vmem:[#allocation4 + $0x120] sm:$0xff]
    %v928 = vld [vmem:[#allocation4 + $0x128] sm:$0xff]
    %v929 = vld [vmem:[#allocation4 + $0x130] sm:$0xff]
    %v930 = vld [vmem:[#allocation4 + $0x138] sm:$0xff]
    %v931 = vld [vmem:[#allocation4 + $0x140] sm:$0xff]
    %v932 = vld [vmem:[#allocation4 + $0x148] sm:$0xff]
    %v933 = vld [vmem:[#allocation4 + $0x150] sm:$0xff]
    %v934 = vld [vmem:[#allocation4 + $0x158] sm:$0xff]
    %v935 = vld [vmem:[#allocation4 + $0x160] sm:$0xff]
    %v936 = vld [vmem:[#allocation4 + $0x168] sm:$0xff]
    %v937 = vld [vmem:[#allocation4 + $0x170] sm:$0xff]
    %v938 = vld [vmem:[#allocation4 + $0x178] sm:$0xff]
    %v939 = vld [vmem:[#allocation4 + $0x180] sm:$0xff]
    %v940 = vld [vmem:[#allocation4 + $0x188] sm:$0xff]
    %v941 = vld [vmem:[#allocation4 + $0x190] sm:$0xff]
    %v942 = vld [vmem:[#allocation4 + $0x198] sm:$0xff]
    %v943 = vld [vmem:[#allocation4 + $0x1a0] sm:$0xff]
    %v944 = vld [vmem:[#allocation4 + $0x1a8] sm:$0xff]
    %v945 = vld [vmem:[#allocation4 + $0x1b0] sm:$0xff]
    %v946 = vld [vmem:[#allocation4 + $0x1b8] sm:$0xff]
    %v947 = vld [vmem:[#allocation4 + $0x1c0] sm:$0xff]
    %v948 = vld [vmem:[#allocation4 + $0x1c8] sm:$0xff]
    %v949 = vld [vmem:[#allocation4 + $0x1d0] sm:$0xff]
    %v950 = vld [vmem:[#allocation4 + $0x1d8] sm:$0xff]
    %v951 = vld [vmem:[#allocation4 + $0x1e0] sm:$0xff]
    %v952 = vld [vmem:[#allocation4 + $0x1e8] sm:$0xff]
    %v953 = vld [vmem:[#allocation4 + $0x1f0] sm:$0xff]
    %v954 = vld [vmem:[#allocation4 + $0x1f8] sm:$0xff]
    %955 = vmatprep.subr.mxu0 %v892
    %956 = vmatpush1.msra.mxu0 %v891
    %957 = vmatprep.subr.mxu0 %v896
    %958 = vmatpush1.msra.mxu0 %v895
    %959 = vmatprep.subr.mxu0 %v900
    %960 = vmatpush1.msra.mxu0 %v899
    %961 = vmatprep.subr.mxu0 %v904
    %962 = vmatpush1.msra.mxu0 %v903
    %963 = vmatprep.subr.mxu0 %v908
    %964 = vmatpush1.msra.mxu0 %v907
    %965 = vmatprep.subr.mxu0 %v912
    %966 = vmatpush1.msra.mxu0 %v911
    %967 = vmatprep.subr.mxu0 %v916
    %968 = vmatpush1.msra.mxu0 %v915
    %969 = vmatprep.subr.mxu0 %v920
    %970 = vmatpush1.msra.mxu0 %v919
    %971 = vmatprep.subr.mxu0 %v924
    %972 = vmatpush1.msra.mxu0 %v923
    %973 = vmatprep.subr.mxu0 %v928
    %974 = vmatpush1.msra.mxu0 %v927
    %975 = vmatprep.subr.mxu0 %v932
    %976 = vmatpush1.msra.mxu0 %v931
    %977 = vmatprep.subr.mxu0 %v936
    %978 = vmatpush1.msra.mxu0 %v935
    %979 = vmatprep.subr.mxu0 %v940
    %980 = vmatpush1.msra.mxu0 %v939
    %981 = vmatprep.subr.mxu0 %v944
    %982 = vmatpush1.msra.mxu0 %v943
    %983 = vmatprep.subr.mxu0 %v948
    %984 = vmatpush1.msra.mxu0 %v947
    %985 = vmatprep.subr.mxu0 %v952
    %986 = vmatpush1.msra.mxu0 %v951
    %987 = vmatprep.subr.mxu0 0.0
    %988 = vmatpush1.msra.mxu0 0.0
    %989 = vmatprep.subr.mxu0 0.0
    %990 = vmatpush1.msra.mxu0 0.0
    %991 = vmatprep.subr.mxu0 0.0
    %992 = vmatpush1.msra.mxu0 0.0
    %993 = vmatprep.subr.mxu0 0.0
    %994 = vmatpush1.msra.mxu0 0.0
    %995 = vmatprep.subr.mxu0 0.0
    %996 = vmatpush1.msra.mxu0 0.0
    %997 = vmatprep.subr.mxu0 0.0
    %998 = vmatpush1.msra.mxu0 0.0
    %999 = vmatprep.subr.mxu0 0.0
    %1000 = vmatpush1.msra.mxu0 0.0
    %1001 = vmatprep.subr.mxu0 0.0
    %1002 = vmatpush1.msra.mxu0 0.0
    %1003 = vmatprep.subr.mxu0 0.0
    %1004 = vmatpush1.msra.mxu0 0.0
    %1005 = vmatprep.subr.mxu0 0.0
    %1006 = vmatpush1.msra.mxu0 0.0
    %1007 = vmatprep.subr.mxu0 0.0
    %1008 = vmatpush1.msra.mxu0 0.0
    %1009 = vmatprep.subr.mxu0 0.0
    %1010 = vmatpush1.msra.mxu0 0.0
    %1011 = vmatprep.subr.mxu0 0.0
    %1012 = vmatpush1.msra.mxu0 0.0
    %1013 = vmatprep.subr.mxu0 0.0
    %1014 = vmatpush1.msra.mxu0 0.0
    %1015 = vmatprep.subr.mxu0 0.0
    %1016 = vmatpush1.msra.mxu0 0.0
    %1017 = vmatprep.subr.mxu0 0.0
    %1018 = vmatpush1.msra.mxu0 0.0
    %1019 = vmatprep.mubr.f32.mxu0 0.0
    %1020 = vmatmul.mubr.f32.gmra.mrb[0].mxu0 %v887
    %v1021 = vpop.f32.mrb[0].mxu0
    %v1022 = vadd.f32 0.0, %v1021
    %v1023 = vpop.f32.mrb[0].mxu0
    %v1024 = vadd.f32 0.0, %v1023
    %1025 = vdwg.mxu0
    %1026 = vmatprep.subr.mxu0 %v894
    %1027 = vmatpush1.msra.mxu0 %v893
    %1028 = vmatprep.subr.mxu0 %v898
    %1029 = vmatpush1.msra.mxu0 %v897
    %1030 = vmatprep.subr.mxu0 %v902
    %1031 = vmatpush1.msra.mxu0 %v901
    %1032 = vmatprep.subr.mxu0 %v906
    %1033 = vmatpush1.msra.mxu0 %v905
    %1034 = vmatprep.subr.mxu0 %v910
    %1035 = vmatpush1.msra.mxu0 %v909
    %1036 = vmatprep.subr.mxu0 %v914
    %1037 = vmatpush1.msra.mxu0 %v913
    %1038 = vmatprep.subr.mxu0 %v918
    %1039 = vmatpush1.msra.mxu0 %v917
    %1040 = vmatprep.subr.mxu0 %v922
    %1041 = vmatpush1.msra.mxu0 %v921
    %1042 = vmatprep.subr.mxu0 %v926
    %1043 = vmatpush1.msra.mxu0 %v925
    %1044 = vmatprep.subr.mxu0 %v930
    %1045 = vmatpush1.msra.mxu0 %v929
    %1046 = vmatprep.subr.mxu0 %v934
    %1047 = vmatpush1.msra.mxu0 %v933
    %1048 = vmatprep.subr.mxu0 %v938
    %1049 = vmatpush1.msra.mxu0 %v937
    %1050 = vmatprep.subr.mxu0 %v942
    %1051 = vmatpush1.msra.mxu0 %v941
    %1052 = vmatprep.subr.mxu0 %v946
    %1053 = vmatpush1.msra.mxu0 %v945
    %1054 = vmatprep.subr.mxu0 %v950
    %1055 = vmatpush1.msra.mxu0 %v949
    %1056 = vmatprep.subr.mxu0 %v954
    %1057 = vmatpush1.msra.mxu0 %v953
    %1058 = vmatprep.subr.mxu0 0.0
    %1059 = vmatpush1.msra.mxu0 0.0
    %1060 = vmatprep.subr.mxu0 0.0
    %1061 = vmatpush1.msra.mxu0 0.0
    %1062 = vmatprep.subr.mxu0 0.0
    %1063 = vmatpush1.msra.mxu0 0.0
    %1064 = vmatprep.subr.mxu0 0.0
    %1065 = vmatpush1.msra.mxu0 0.0
    %1066 = vmatprep.subr.mxu0 0.0
    %1067 = vmatpush1.msra.mxu0 0.0
    %1068 = vmatprep.subr.mxu0 0.0
    %1069 = vmatpush1.msra.mxu0 0.0
    %1070 = vmatprep.subr.mxu0 0.0
    %1071 = vmatpush1.msra.mxu0 0.0
    %1072 = vmatprep.subr.mxu0 0.0
    %1073 = vmatpush1.msra.mxu0 0.0
    %1074 = vmatprep.subr.mxu0 0.0
    %1075 = vmatpush1.msra.mxu0 0.0
    %1076 = vmatprep.subr.mxu0 0.0
    %1077 = vmatpush1.msra.mxu0 0.0
    %1078 = vmatprep.subr.mxu0 0.0
    %1079 = vmatpush1.msra.mxu0 0.0
    %1080 = vmatprep.subr.mxu0 0.0
    %1081 = vmatpush1.msra.mxu0 0.0
    %1082 = vmatprep.subr.mxu0 0.0
    %1083 = vmatpush1.msra.mxu0 0.0
    %1084 = vmatprep.subr.mxu0 0.0
    %1085 = vmatpush1.msra.mxu0 0.0
    %1086 = vmatprep.subr.mxu0 0.0
    %1087 = vmatpush1.msra.mxu0 0.0
    %1088 = vmatprep.subr.mxu0 0.0
    %1089 = vmatpush1.msra.mxu0 0.0
    %1090 = vmatprep.mubr.f32.mxu0 0.0
    %1091 = vmatmul.mubr.f32.gmra.mrb[0].mxu0 %v887
    %v1092 = vpop.f32.mrb[0].mxu0
    %v1093 = vadd.f32 0.0, %v1092
    %v1094 = vpop.f32.mrb[0].mxu0
    %v1095 = vadd.f32 0.0, %v1094
    %1096 = vdwg.mxu0
    %v1101 = vcombine.low %v1022, %v1024
    %v1102 = vcombine.low %v1093, %v1095
    %v1104 = vunpack.c.l.s4 1966171168
    %v1105 = vunpack.c.0.s8 %v1104
    %v1106 = vlaneseq
    %v1107 = vshrl.u32 %v1106, 7
    %v1108 = vsub.s32 %v1105, %v1107
    %v1109 = vrot.slane %v1101, %v1108
    %v1111 = vunpack.c.l.s4 1966171168
    %v1112 = vunpack.c.0.s8 %v1111
    %v1113 = vlaneseq
    %v1114 = vshrl.u32 %v1113, 7
    %v1115 = vsub.s32 %v1112, %v1114
    %v1116 = vrot.slane %v1102, %v1115
    %v1117 = vcombine.low %v1109, %v1116
    %v1119 = vunpack.c.l.s4 1966171168
    %v1120 = vunpack.c.0.s8 %v1119
    %v1121 = vlaneseq
    %v1122 = vshrl.u32 %v1121, 7
    %v1123 = vsub.s32 %v1120, %v1122
    %v1124 = vrot.slane %v1117, %v1123
    %v1126 = vadd.f32 %v890, %v1124
    %v1127 = vxor.u32 %v1126, 2147483648
    %v1128 = vmul.f32 %v1127, 1.442695
    %v1129 = vpow.pop %v1128
    %v1130 = vadd.f32 %v1129, 1.0
    %v1131 = vrcp.pop %v1130
    %v1132 = vmul.f32 1.0, %v1131
    %v1134 = vrot.slane %v1126, 3
    %v1136 = vtanh.pop %v1134
    %v1138 = vrot.slane %v1132, 1
    %v1140 = vmul.f32 %v1138, %v883
    %v1141 = vmul.f32 %v1132, %v1136
    %v1142 = vadd.f32 %v1140, %v1141
    %v1143 = vtanh.pop %v1142
    %v1144 = vrot.slane %v1132, 2
    %v1146 = vmul.f32 %v1144, %v1143
    %1147 = vst [vmem:[#allocation3 + $0x3] sm:$0x1] %v1146
    %s1148 = scalar_lea.vmem [#allocation2], 4
    %v1149 = vld [vmem:[%s1148] ss:$8 sm:$0xf]
    %v1150 = vld [vmem:[#allocation4] sm:$0xff]
    %v1151 = vld [vmem:[#allocation4 + $0x8] sm:$0xff]
    %v1152 = vld [vmem:[#allocation4 + $0x10] sm:$0xff]
    %v1153 = vld [vmem:[#allocation4 + $0x18] sm:$0xff]
    %v1154 = vld [vmem:[#allocation4 + $0x20] sm:$0xff]
    %v1155 = vld [vmem:[#allocation4 + $0x28] sm:$0xff]
    %v1156 = vld [vmem:[#allocation4 + $0x30] sm:$0xff]
    %v1157 = vld [vmem:[#allocation4 + $0x38] sm:$0xff]
    %v1158 = vld [vmem:[#allocation4 + $0x40] sm:$0xff]
    %v1159 = vld [vmem:[#allocation4 + $0x48] sm:$0xff]
    %v1160 = vld [vmem:[#allocation4 + $0x50] sm:$0xff]
    %v1161 = vld [vmem:[#allocation4 + $0x58] sm:$0xff]
    %v1162 = vld [vmem:[#allocation4 + $0x60] sm:$0xff]
    %v1163 = vld [vmem:[#allocation4 + $0x68] sm:$0xff]
    %v1164 = vld [vmem:[#allocation4 + $0x70] sm:$0xff]
    %v1165 = vld [vmem:[#allocation4 + $0x78] sm:$0xff]
    %v1166 = vld [vmem:[#allocation4 + $0x80] sm:$0xff]
    %v1167 = vld [vmem:[#allocation4 + $0x88] sm:$0xff]
    %v1168 = vld [vmem:[#allocation4 + $0x90] sm:$0xff]
    %v1169 = vld [vmem:[#allocation4 + $0x98] sm:$0xff]
    %v1170 = vld [vmem:[#allocation4 + $0xa0] sm:$0xff]
    %v1171 = vld [vmem:[#allocation4 + $0xa8] sm:$0xff]
    %v1172 = vld [vmem:[#allocation4 + $0xb0] sm:$0xff]
    %v1173 = vld [vmem:[#allocation4 + $0xb8] sm:$0xff]
    %v1174 = vld [vmem:[#allocation4 + $0xc0] sm:$0xff]
    %v1175 = vld [vmem:[#allocation4 + $0xc8] sm:$0xff]
    %v1176 = vld [vmem:[#allocation4 + $0xd0] sm:$0xff]
    %v1177 = vld [vmem:[#allocation4 + $0xd8] sm:$0xff]
    %v1178 = vld [vmem:[#allocation4 + $0xe0] sm:$0xff]
    %v1179 = vld [vmem:[#allocation4 + $0xe8] sm:$0xff]
    %v1180 = vld [vmem:[#allocation4 + $0xf0] sm:$0xff]
    %v1181 = vld [vmem:[#allocation4 + $0xf8] sm:$0xff]
    %v1182 = vld [vmem:[#allocation4 + $0x100] sm:$0xff]
    %v1183 = vld [vmem:[#allocation4 + $0x108] sm:$0xff]
    %v1184 = vld [vmem:[#allocation4 + $0x110] sm:$0xff]
    %v1185 = vld [vmem:[#allocation4 + $0x118] sm:$0xff]
    %v1186 = vld [vmem:[#allocation4 + $0x120] sm:$0xff]
    %v1187 = vld [vmem:[#allocation4 + $0x128] sm:$0xff]
    %v1188 = vld [vmem:[#allocation4 + $0x130] sm:$0xff]
    %v1189 = vld [vmem:[#allocation4 + $0x138] sm:$0xff]
    %v1190 = vld [vmem:[#allocation4 + $0x140] sm:$0xff]
    %v1191 = vld [vmem:[#allocation4 + $0x148] sm:$0xff]
    %v1192 = vld [vmem:[#allocation4 + $0x150] sm:$0xff]
    %v1193 = vld [vmem:[#allocation4 + $0x158] sm:$0xff]
    %v1194 = vld [vmem:[#allocation4 + $0x160] sm:$0xff]
    %v1195 = vld [vmem:[#allocation4 + $0x168] sm:$0xff]
    %v1196 = vld [vmem:[#allocation4 + $0x170] sm:$0xff]
    %v1197 = vld [vmem:[#allocation4 + $0x178] sm:$0xff]
    %v1198 = vld [vmem:[#allocation4 + $0x180] sm:$0xff]
    %v1199 = vld [vmem:[#allocation4 + $0x188] sm:$0xff]
    %v1200 = vld [vmem:[#allocation4 + $0x190] sm:$0xff]
    %v1201 = vld [vmem:[#allocation4 + $0x198] sm:$0xff]
    %v1202 = vld [vmem:[#allocation4 + $0x1a0] sm:$0xff]
    %v1203 = vld [vmem:[#allocation4 + $0x1a8] sm:$0xff]
    %v1204 = vld [vmem:[#allocation4 + $0x1b0] sm:$0xff]
    %v1205 = vld [vmem:[#allocation4 + $0x1b8] sm:$0xff]
    %v1206 = vld [vmem:[#allocation4 + $0x1c0] sm:$0xff]
    %v1207 = vld [vmem:[#allocation4 + $0x1c8] sm:$0xff]
    %v1208 = vld [vmem:[#allocation4 + $0x1d0] sm:$0xff]
    %v1209 = vld [vmem:[#allocation4 + $0x1d8] sm:$0xff]
    %v1210 = vld [vmem:[#allocation4 + $0x1e0] sm:$0xff]
    %v1211 = vld [vmem:[#allocation4 + $0x1e8] sm:$0xff]
    %v1212 = vld [vmem:[#allocation4 + $0x1f0] sm:$0xff]
    %v1213 = vld [vmem:[#allocation4 + $0x1f8] sm:$0xff]
    %1214 = vmatprep.subr.mxu0 %v1151
    %1215 = vmatpush1.msra.mxu0 %v1150
    %1216 = vmatprep.subr.mxu0 %v1155
    %1217 = vmatpush1.msra.mxu0 %v1154
    %1218 = vmatprep.subr.mxu0 %v1159
    %1219 = vmatpush1.msra.mxu0 %v1158
    %1220 = vmatprep.subr.mxu0 %v1163
    %1221 = vmatpush1.msra.mxu0 %v1162
    %1222 = vmatprep.subr.mxu0 %v1167
    %1223 = vmatpush1.msra.mxu0 %v1166
    %1224 = vmatprep.subr.mxu0 %v1171
    %1225 = vmatpush1.msra.mxu0 %v1170
    %1226 = vmatprep.subr.mxu0 %v1175
    %1227 = vmatpush1.msra.mxu0 %v1174
    %1228 = vmatprep.subr.mxu0 %v1179
    %1229 = vmatpush1.msra.mxu0 %v1178
    %1230 = vmatprep.subr.mxu0 %v1183
    %1231 = vmatpush1.msra.mxu0 %v1182
    %1232 = vmatprep.subr.mxu0 %v1187
    %1233 = vmatpush1.msra.mxu0 %v1186
    %1234 = vmatprep.subr.mxu0 %v1191
    %1235 = vmatpush1.msra.mxu0 %v1190
    %1236 = vmatprep.subr.mxu0 %v1195
    %1237 = vmatpush1.msra.mxu0 %v1194
    %1238 = vmatprep.subr.mxu0 %v1199
    %1239 = vmatpush1.msra.mxu0 %v1198
    %1240 = vmatprep.subr.mxu0 %v1203
    %1241 = vmatpush1.msra.mxu0 %v1202
    %1242 = vmatprep.subr.mxu0 %v1207
    %1243 = vmatpush1.msra.mxu0 %v1206
    %1244 = vmatprep.subr.mxu0 %v1211
    %1245 = vmatpush1.msra.mxu0 %v1210
    %1246 = vmatprep.subr.mxu0 0.0
    %1247 = vmatpush1.msra.mxu0 0.0
    %1248 = vmatprep.subr.mxu0 0.0
    %1249 = vmatpush1.msra.mxu0 0.0
    %1250 = vmatprep.subr.mxu0 0.0
    %1251 = vmatpush1.msra.mxu0 0.0
    %1252 = vmatprep.subr.mxu0 0.0
    %1253 = vmatpush1.msra.mxu0 0.0
    %1254 = vmatprep.subr.mxu0 0.0
    %1255 = vmatpush1.msra.mxu0 0.0
    %1256 = vmatprep.subr.mxu0 0.0
    %1257 = vmatpush1.msra.mxu0 0.0
    %1258 = vmatprep.subr.mxu0 0.0
    %1259 = vmatpush1.msra.mxu0 0.0
    %1260 = vmatprep.subr.mxu0 0.0
    %1261 = vmatpush1.msra.mxu0 0.0
    %1262 = vmatprep.subr.mxu0 0.0
    %1263 = vmatpush1.msra.mxu0 0.0
    %1264 = vmatprep.subr.mxu0 0.0
    %1265 = vmatpush1.msra.mxu0 0.0
    %1266 = vmatprep.subr.mxu0 0.0
    %1267 = vmatpush1.msra.mxu0 0.0
    %1268 = vmatprep.subr.mxu0 0.0
    %1269 = vmatpush1.msra.mxu0 0.0
    %1270 = vmatprep.subr.mxu0 0.0
    %1271 = vmatpush1.msra.mxu0 0.0
    %1272 = vmatprep.subr.mxu0 0.0
    %1273 = vmatpush1.msra.mxu0 0.0
    %1274 = vmatprep.subr.mxu0 0.0
    %1275 = vmatpush1.msra.mxu0 0.0
    %1276 = vmatprep.subr.mxu0 0.0
    %1277 = vmatpush1.msra.mxu0 0.0
    %1278 = vmatprep.mubr.f32.mxu0 0.0
    %1279 = vmatmul.mubr.f32.gmra.mrb[0].mxu0 %v1146
    %v1280 = vpop.f32.mrb[0].mxu0
    %v1281 = vadd.f32 0.0, %v1280
    %v1282 = vpop.f32.mrb[0].mxu0
    %v1283 = vadd.f32 0.0, %v1282
    %1284 = vdwg.mxu0
    %1285 = vmatprep.subr.mxu0 %v1153
    %1286 = vmatpush1.msra.mxu0 %v1152
    %1287 = vmatprep.subr.mxu0 %v1157
    %1288 = vmatpush1.msra.mxu0 %v1156
    %1289 = vmatprep.subr.mxu0 %v1161
    %1290 = vmatpush1.msra.mxu0 %v1160
    %1291 = vmatprep.subr.mxu0 %v1165
    %1292 = vmatpush1.msra.mxu0 %v1164
    %1293 = vmatprep.subr.mxu0 %v1169
    %1294 = vmatpush1.msra.mxu0 %v1168
    %1295 = vmatprep.subr.mxu0 %v1173
    %1296 = vmatpush1.msra.mxu0 %v1172
    %1297 = vmatprep.subr.mxu0 %v1177
    %1298 = vmatpush1.msra.mxu0 %v1176
    %1299 = vmatprep.subr.mxu0 %v1181
    %1300 = vmatpush1.msra.mxu0 %v1180
    %1301 = vmatprep.subr.mxu0 %v1185
    %1302 = vmatpush1.msra.mxu0 %v1184
    %1303 = vmatprep.subr.mxu0 %v1189
    %1304 = vmatpush1.msra.mxu0 %v1188
    %1305 = vmatprep.subr.mxu0 %v1193
    %1306 = vmatpush1.msra.mxu0 %v1192
    %1307 = vmatprep.subr.mxu0 %v1197
    %1308 = vmatpush1.msra.mxu0 %v1196
    %1309 = vmatprep.subr.mxu0 %v1201
    %1310 = vmatpush1.msra.mxu0 %v1200
    %1311 = vmatprep.subr.mxu0 %v1205
    %1312 = vmatpush1.msra.mxu0 %v1204
    %1313 = vmatprep.subr.mxu0 %v1209
    %1314 = vmatpush1.msra.mxu0 %v1208
    %1315 = vmatprep.subr.mxu0 %v1213
    %1316 = vmatpush1.msra.mxu0 %v1212
    %1317 = vmatprep.subr.mxu0 0.0
    %1318 = vmatpush1.msra.mxu0 0.0
    %1319 = vmatprep.subr.mxu0 0.0
    %1320 = vmatpush1.msra.mxu0 0.0
    %1321 = vmatprep.subr.mxu0 0.0
    %1322 = vmatpush1.msra.mxu0 0.0
    %1323 = vmatprep.subr.mxu0 0.0
    %1324 = vmatpush1.msra.mxu0 0.0
    %1325 = vmatprep.subr.mxu0 0.0
    %1326 = vmatpush1.msra.mxu0 0.0
    %1327 = vmatprep.subr.mxu0 0.0
    %1328 = vmatpush1.msra.mxu0 0.0
    %1329 = vmatprep.subr.mxu0 0.0
    %1330 = vmatpush1.msra.mxu0 0.0
    %1331 = vmatprep.subr.mxu0 0.0
    %1332 = vmatpush1.msra.mxu0 0.0
    %1333 = vmatprep.subr.mxu0 0.0
    %1334 = vmatpush1.msra.mxu0 0.0
    %1335 = vmatprep.subr.mxu0 0.0
    %1336 = vmatpush1.msra.mxu0 0.0
    %1337 = vmatprep.subr.mxu0 0.0
    %1338 = vmatpush1.msra.mxu0 0.0
    %1339 = vmatprep.subr.mxu0 0.0
    %1340 = vmatpush1.msra.mxu0 0.0
    %1341 = vmatprep.subr.mxu0 0.0
    %1342 = vmatpush1.msra.mxu0 0.0
    %1343 = vmatprep.subr.mxu0 0.0
    %1344 = vmatpush1.msra.mxu0 0.0
    %1345 = vmatprep.subr.mxu0 0.0
    %1346 = vmatpush1.msra.mxu0 0.0
    %1347 = vmatprep.subr.mxu0 0.0
    %1348 = vmatpush1.msra.mxu0 0.0
    %1349 = vmatprep.mubr.f32.mxu0 0.0
    %1350 = vmatmul.mubr.f32.gmra.mrb[0].mxu0 %v1146
    %v1351 = vpop.f32.mrb[0].mxu0
    %v1352 = vadd.f32 0.0, %v1351
    %v1353 = vpop.f32.mrb[0].mxu0
    %v1354 = vadd.f32 0.0, %v1353
    %1355 = vdwg.mxu0
    %v1360 = vcombine.low %v1281, %v1283
    %v1361 = vcombine.low %v1352, %v1354
    %v1363 = vunpack.c.l.s4 1966171168
    %v1364 = vunpack.c.0.s8 %v1363
    %v1365 = vlaneseq
    %v1366 = vshrl.u32 %v1365, 7
    %v1367 = vsub.s32 %v1364, %v1366
    %v1368 = vrot.slane %v1360, %v1367
    %v1370 = vunpack.c.l.s4 1966171168
    %v1371 = vunpack.c.0.s8 %v1370
    %v1372 = vlaneseq
    %v1373 = vshrl.u32 %v1372, 7
    %v1374 = vsub.s32 %v1371, %v1373
    %v1375 = vrot.slane %v1361, %v1374
    %v1376 = vcombine.low %v1368, %v1375
    %v1378 = vunpack.c.l.s4 1966171168
    %v1379 = vunpack.c.0.s8 %v1378
    %v1380 = vlaneseq
    %v1381 = vshrl.u32 %v1380, 7
    %v1382 = vsub.s32 %v1379, %v1381
    %v1383 = vrot.slane %v1376, %v1382
    %v1385 = vadd.f32 %v1149, %v1383
    %v1386 = vxor.u32 %v1385, 2147483648
    %v1387 = vmul.f32 %v1386, 1.442695
    %v1388 = vpow.pop %v1387
    %v1389 = vadd.f32 %v1388, 1.0
    %v1390 = vrcp.pop %v1389
    %v1391 = vmul.f32 1.0, %v1390
    %v1393 = vrot.slane %v1385, 3
    %v1395 = vtanh.pop %v1393
    %v1397 = vrot.slane %v1391, 1
    %v1399 = vmul.f32 %v1397, %v1142
    %v1400 = vmul.f32 %v1391, %v1395
    %v1401 = vadd.f32 %v1399, %v1400
    %v1402 = vtanh.pop %v1401
    %v1403 = vrot.slane %v1391, 2
    %v1405 = vmul.f32 %v1403, %v1402
    %1406 = vst [vmem:[#allocation3 + $0x4] sm:$0x1] %v1405
    %s1407 = scalar_lea.vmem [#allocation2], 5
    %v1408 = vld [vmem:[%s1407] ss:$8 sm:$0xf]
    %v1409 = vld [vmem:[#allocation4] sm:$0xff]
    %v1410 = vld [vmem:[#allocation4 + $0x8] sm:$0xff]
    %v1411 = vld [vmem:[#allocation4 + $0x10] sm:$0xff]
    %v1412 = vld [vmem:[#allocation4 + $0x18] sm:$0xff]
    %v1413 = vld [vmem:[#allocation4 + $0x20] sm:$0xff]
    %v1414 = vld [vmem:[#allocation4 + $0x28] sm:$0xff]
    %v1415 = vld [vmem:[#allocation4 + $0x30] sm:$0xff]
    %v1416 = vld [vmem:[#allocation4 + $0x38] sm:$0xff]
    %v1417 = vld [vmem:[#allocation4 + $0x40] sm:$0xff]
    %v1418 = vld [vmem:[#allocation4 + $0x48] sm:$0xff]
    %v1419 = vld [vmem:[#allocation4 + $0x50] sm:$0xff]
    %v1420 = vld [vmem:[#allocation4 + $0x58] sm:$0xff]
    %v1421 = vld [vmem:[#allocation4 + $0x60] sm:$0xff]
    %v1422 = vld [vmem:[#allocation4 + $0x68] sm:$0xff]
    %v1423 = vld [vmem:[#allocation4 + $0x70] sm:$0xff]
    %v1424 = vld [vmem:[#allocation4 + $0x78] sm:$0xff]
    %v1425 = vld [vmem:[#allocation4 + $0x80] sm:$0xff]
    %v1426 = vld [vmem:[#allocation4 + $0x88] sm:$0xff]
    %v1427 = vld [vmem:[#allocation4 + $0x90] sm:$0xff]
    %v1428 = vld [vmem:[#allocation4 + $0x98] sm:$0xff]
    %v1429 = vld [vmem:[#allocation4 + $0xa0] sm:$0xff]
    %v1430 = vld [vmem:[#allocation4 + $0xa8] sm:$0xff]
    %v1431 = vld [vmem:[#allocation4 + $0xb0] sm:$0xff]
    %v1432 = vld [vmem:[#allocation4 + $0xb8] sm:$0xff]
    %v1433 = vld [vmem:[#allocation4 + $0xc0] sm:$0xff]
    %v1434 = vld [vmem:[#allocation4 + $0xc8] sm:$0xff]
    %v1435 = vld [vmem:[#allocation4 + $0xd0] sm:$0xff]
    %v1436 = vld [vmem:[#allocation4 + $0xd8] sm:$0xff]
    %v1437 = vld [vmem:[#allocation4 + $0xe0] sm:$0xff]
    %v1438 = vld [vmem:[#allocation4 + $0xe8] sm:$0xff]
    %v1439 = vld [vmem:[#allocation4 + $0xf0] sm:$0xff]
    %v1440 = vld [vmem:[#allocation4 + $0xf8] sm:$0xff]
    %v1441 = vld [vmem:[#allocation4 + $0x100] sm:$0xff]
    %v1442 = vld [vmem:[#allocation4 + $0x108] sm:$0xff]
    %v1443 = vld [vmem:[#allocation4 + $0x110] sm:$0xff]
    %v1444 = vld [vmem:[#allocation4 + $0x118] sm:$0xff]
    %v1445 = vld [vmem:[#allocation4 + $0x120] sm:$0xff]
    %v1446 = vld [vmem:[#allocation4 + $0x128] sm:$0xff]
    %v1447 = vld [vmem:[#allocation4 + $0x130] sm:$0xff]
    %v1448 = vld [vmem:[#allocation4 + $0x138] sm:$0xff]
    %v1449 = vld [vmem:[#allocation4 + $0x140] sm:$0xff]
    %v1450 = vld [vmem:[#allocation4 + $0x148] sm:$0xff]
    %v1451 = vld [vmem:[#allocation4 + $0x150] sm:$0xff]
    %v1452 = vld [vmem:[#allocation4 + $0x158] sm:$0xff]
    %v1453 = vld [vmem:[#allocation4 + $0x160] sm:$0xff]
    %v1454 = vld [vmem:[#allocation4 + $0x168] sm:$0xff]
    %v1455 = vld [vmem:[#allocation4 + $0x170] sm:$0xff]
    %v1456 = vld [vmem:[#allocation4 + $0x178] sm:$0xff]
    %v1457 = vld [vmem:[#allocation4 + $0x180] sm:$0xff]
    %v1458 = vld [vmem:[#allocation4 + $0x188] sm:$0xff]
    %v1459 = vld [vmem:[#allocation4 + $0x190] sm:$0xff]
    %v1460 = vld [vmem:[#allocation4 + $0x198] sm:$0xff]
    %v1461 = vld [vmem:[#allocation4 + $0x1a0] sm:$0xff]
    %v1462 = vld [vmem:[#allocation4 + $0x1a8] sm:$0xff]
    %v1463 = vld [vmem:[#allocation4 + $0x1b0] sm:$0xff]
    %v1464 = vld [vmem:[#allocation4 + $0x1b8] sm:$0xff]
    %v1465 = vld [vmem:[#allocation4 + $0x1c0] sm:$0xff]
    %v1466 = vld [vmem:[#allocation4 + $0x1c8] sm:$0xff]
    %v1467 = vld [vmem:[#allocation4 + $0x1d0] sm:$0xff]
    %v1468 = vld [vmem:[#allocation4 + $0x1d8] sm:$0xff]
    %v1469 = vld [vmem:[#allocation4 + $0x1e0] sm:$0xff]
    %v1470 = vld [vmem:[#allocation4 + $0x1e8] sm:$0xff]
    %v1471 = vld [vmem:[#allocation4 + $0x1f0] sm:$0xff]
    %v1472 = vld [vmem:[#allocation4 + $0x1f8] sm:$0xff]
    %1473 = vmatprep.subr.mxu0 %v1410
    %1474 = vmatpush1.msra.mxu0 %v1409
    %1475 = vmatprep.subr.mxu0 %v1414
    %1476 = vmatpush1.msra.mxu0 %v1413
    %1477 = vmatprep.subr.mxu0 %v1418
    %1478 = vmatpush1.msra.mxu0 %v1417
    %1479 = vmatprep.subr.mxu0 %v1422
    %1480 = vmatpush1.msra.mxu0 %v1421
    %1481 = vmatprep.subr.mxu0 %v1426
    %1482 = vmatpush1.msra.mxu0 %v1425
    %1483 = vmatprep.subr.mxu0 %v1430
    %1484 = vmatpush1.msra.mxu0 %v1429
    %1485 = vmatprep.subr.mxu0 %v1434
    %1486 = vmatpush1.msra.mxu0 %v1433
    %1487 = vmatprep.subr.mxu0 %v1438
    %1488 = vmatpush1.msra.mxu0 %v1437
    %1489 = vmatprep.subr.mxu0 %v1442
    %1490 = vmatpush1.msra.mxu0 %v1441
    %1491 = vmatprep.subr.mxu0 %v1446
    %1492 = vmatpush1.msra.mxu0 %v1445
    %1493 = vmatprep.subr.mxu0 %v1450
    %1494 = vmatpush1.msra.mxu0 %v1449
    %1495 = vmatprep.subr.mxu0 %v1454
    %1496 = vmatpush1.msra.mxu0 %v1453
    %1497 = vmatprep.subr.mxu0 %v1458
    %1498 = vmatpush1.msra.mxu0 %v1457
    %1499 = vmatprep.subr.mxu0 %v1462
    %1500 = vmatpush1.msra.mxu0 %v1461
    %1501 = vmatprep.subr.mxu0 %v1466
    %1502 = vmatpush1.msra.mxu0 %v1465
    %1503 = vmatprep.subr.mxu0 %v1470
    %1504 = vmatpush1.msra.mxu0 %v1469
    %1505 = vmatprep.subr.mxu0 0.0
    %1506 = vmatpush1.msra.mxu0 0.0
    %1507 = vmatprep.subr.mxu0 0.0
    %1508 = vmatpush1.msra.mxu0 0.0
    %1509 = vmatprep.subr.mxu0 0.0
    %1510 = vmatpush1.msra.mxu0 0.0
    %1511 = vmatprep.subr.mxu0 0.0
    %1512 = vmatpush1.msra.mxu0 0.0
    %1513 = vmatprep.subr.mxu0 0.0
    %1514 = vmatpush1.msra.mxu0 0.0
    %1515 = vmatprep.subr.mxu0 0.0
    %1516 = vmatpush1.msra.mxu0 0.0
    %1517 = vmatprep.subr.mxu0 0.0
    %1518 = vmatpush1.msra.mxu0 0.0
    %1519 = vmatprep.subr.mxu0 0.0
    %1520 = vmatpush1.msra.mxu0 0.0
    %1521 = vmatprep.subr.mxu0 0.0
    %1522 = vmatpush1.msra.mxu0 0.0
    %1523 = vmatprep.subr.mxu0 0.0
    %1524 = vmatpush1.msra.mxu0 0.0
    %1525 = vmatprep.subr.mxu0 0.0
    %1526 = vmatpush1.msra.mxu0 0.0
    %1527 = vmatprep.subr.mxu0 0.0
    %1528 = vmatpush1.msra.mxu0 0.0
    %1529 = vmatprep.subr.mxu0 0.0
    %1530 = vmatpush1.msra.mxu0 0.0
    %1531 = vmatprep.subr.mxu0 0.0
    %1532 = vmatpush1.msra.mxu0 0.0
    %1533 = vmatprep.subr.mxu0 0.0
    %1534 = vmatpush1.msra.mxu0 0.0
    %1535 = vmatprep.subr.mxu0 0.0
    %1536 = vmatpush1.msra.mxu0 0.0
    %1537 = vmatprep.mubr.f32.mxu0 0.0
    %1538 = vmatmul.mubr.f32.gmra.mrb[0].mxu0 %v1405
    %v1539 = vpop.f32.mrb[0].mxu0
    %v1540 = vadd.f32 0.0, %v1539
    %v1541 = vpop.f32.mrb[0].mxu0
    %v1542 = vadd.f32 0.0, %v1541
    %1543 = vdwg.mxu0
    %1544 = vmatprep.subr.mxu0 %v1412
    %1545 = vmatpush1.msra.mxu0 %v1411
    %1546 = vmatprep.subr.mxu0 %v1416
    %1547 = vmatpush1.msra.mxu0 %v1415
    %1548 = vmatprep.subr.mxu0 %v1420
    %1549 = vmatpush1.msra.mxu0 %v1419
    %1550 = vmatprep.subr.mxu0 %v1424
    %1551 = vmatpush1.msra.mxu0 %v1423
    %1552 = vmatprep.subr.mxu0 %v1428
    %1553 = vmatpush1.msra.mxu0 %v1427
    %1554 = vmatprep.subr.mxu0 %v1432
    %1555 = vmatpush1.msra.mxu0 %v1431
    %1556 = vmatprep.subr.mxu0 %v1436
    %1557 = vmatpush1.msra.mxu0 %v1435
    %1558 = vmatprep.subr.mxu0 %v1440
    %1559 = vmatpush1.msra.mxu0 %v1439
    %1560 = vmatprep.subr.mxu0 %v1444
    %1561 = vmatpush1.msra.mxu0 %v1443
    %1562 = vmatprep.subr.mxu0 %v1448
    %1563 = vmatpush1.msra.mxu0 %v1447
    %1564 = vmatprep.subr.mxu0 %v1452
    %1565 = vmatpush1.msra.mxu0 %v1451
    %1566 = vmatprep.subr.mxu0 %v1456
    %1567 = vmatpush1.msra.mxu0 %v1455
    %1568 = vmatprep.subr.mxu0 %v1460
    %1569 = vmatpush1.msra.mxu0 %v1459
    %1570 = vmatprep.subr.mxu0 %v1464
    %1571 = vmatpush1.msra.mxu0 %v1463
    %1572 = vmatprep.subr.mxu0 %v1468
    %1573 = vmatpush1.msra.mxu0 %v1467
    %1574 = vmatprep.subr.mxu0 %v1472
    %1575 = vmatpush1.msra.mxu0 %v1471
    %1576 = vmatprep.subr.mxu0 0.0
    %1577 = vmatpush1.msra.mxu0 0.0
    %1578 = vmatprep.subr.mxu0 0.0
    %1579 = vmatpush1.msra.mxu0 0.0
    %1580 = vmatprep.subr.mxu0 0.0
    %1581 = vmatpush1.msra.mxu0 0.0
    %1582 = vmatprep.subr.mxu0 0.0
    %1583 = vmatpush1.msra.mxu0 0.0
    %1584 = vmatprep.subr.mxu0 0.0
    %1585 = vmatpush1.msra.mxu0 0.0
    %1586 = vmatprep.subr.mxu0 0.0
    %1587 = vmatpush1.msra.mxu0 0.0
    %1588 = vmatprep.subr.mxu0 0.0
    %1589 = vmatpush1.msra.mxu0 0.0
    %1590 = vmatprep.subr.mxu0 0.0
    %1591 = vmatpush1.msra.mxu0 0.0
    %1592 = vmatprep.subr.mxu0 0.0
    %1593 = vmatpush1.msra.mxu0 0.0
    %1594 = vmatprep.subr.mxu0 0.0
    %1595 = vmatpush1.msra.mxu0 0.0
    %1596 = vmatprep.subr.mxu0 0.0
    %1597 = vmatpush1.msra.mxu0 0.0
    %1598 = vmatprep.subr.mxu0 0.0
    %1599 = vmatpush1.msra.mxu0 0.0
    %1600 = vmatprep.subr.mxu0 0.0
    %1601 = vmatpush1.msra.mxu0 0.0
    %1602 = vmatprep.subr.mxu0 0.0
    %1603 = vmatpush1.msra.mxu0 0.0
    %1604 = vmatprep.subr.mxu0 0.0
    %1605 = vmatpush1.msra.mxu0 0.0
    %1606 = vmatprep.subr.mxu0 0.0
    %1607 = vmatpush1.msra.mxu0 0.0
    %1608 = vmatprep.mubr.f32.mxu0 0.0
    %1609 = vmatmul.mubr.f32.gmra.mrb[0].mxu0 %v1405
    %v1610 = vpop.f32.mrb[0].mxu0
    %v1611 = vadd.f32 0.0, %v1610
    %v1612 = vpop.f32.mrb[0].mxu0
    %v1613 = vadd.f32 0.0, %v1612
    %1614 = vdwg.mxu0
    %v1619 = vcombine.low %v1540, %v1542
    %v1620 = vcombine.low %v1611, %v1613
    %v1622 = vunpack.c.l.s4 1966171168
    %v1623 = vunpack.c.0.s8 %v1622
    %v1624 = vlaneseq
    %v1625 = vshrl.u32 %v1624, 7
    %v1626 = vsub.s32 %v1623, %v1625
    %v1627 = vrot.slane %v1619, %v1626
    %v1629 = vunpack.c.l.s4 1966171168
    %v1630 = vunpack.c.0.s8 %v1629
    %v1631 = vlaneseq
    %v1632 = vshrl.u32 %v1631, 7
    %v1633 = vsub.s32 %v1630, %v1632
    %v1634 = vrot.slane %v1620, %v1633
    %v1635 = vcombine.low %v1627, %v1634
    %v1637 = vunpack.c.l.s4 1966171168
    %v1638 = vunpack.c.0.s8 %v1637
    %v1639 = vlaneseq
    %v1640 = vshrl.u32 %v1639, 7
    %v1641 = vsub.s32 %v1638, %v1640
    %v1642 = vrot.slane %v1635, %v1641
    %v1644 = vadd.f32 %v1408, %v1642
    %v1645 = vxor.u32 %v1644, 2147483648
    %v1646 = vmul.f32 %v1645, 1.442695
    %v1647 = vpow.pop %v1646
    %v1648 = vadd.f32 %v1647, 1.0
    %v1649 = vrcp.pop %v1648
    %v1650 = vmul.f32 1.0, %v1649
    %v1652 = vrot.slane %v1644, 3
    %v1654 = vtanh.pop %v1652
    %v1656 = vrot.slane %v1650, 1
    %v1658 = vmul.f32 %v1656, %v1401
    %v1659 = vmul.f32 %v1650, %v1654
    %v1660 = vadd.f32 %v1658, %v1659
    %v1661 = vtanh.pop %v1660
    %v1662 = vrot.slane %v1650, 2
    %v1664 = vmul.f32 %v1662, %v1661
    %1665 = vst [vmem:[#allocation3 + $0x5] sm:$0x1] %v1664
    %s1666 = scalar_lea.vmem [#allocation2], 6
    %v1667 = vld [vmem:[%s1666] ss:$8 sm:$0xf]
    %v1668 = vld [vmem:[#allocation4] sm:$0xff]
    %v1669 = vld [vmem:[#allocation4 + $0x8] sm:$0xff]
    %v1670 = vld [vmem:[#allocation4 + $0x10] sm:$0xff]
    %v1671 = vld [vmem:[#allocation4 + $0x18] sm:$0xff]
    %v1672 = vld [vmem:[#allocation4 + $0x20] sm:$0xff]
    %v1673 = vld [vmem:[#allocation4 + $0x28] sm:$0xff]
    %v1674 = vld [vmem:[#allocation4 + $0x30] sm:$0xff]
    %v1675 = vld [vmem:[#allocation4 + $0x38] sm:$0xff]
    %v1676 = vld [vmem:[#allocation4 + $0x40] sm:$0xff]
    %v1677 = vld [vmem:[#allocation4 + $0x48] sm:$0xff]
    %v1678 = vld [vmem:[#allocation4 + $0x50] sm:$0xff]
    %v1679 = vld [vmem:[#allocation4 + $0x58] sm:$0xff]
    %v1680 = vld [vmem:[#allocation4 + $0x60] sm:$0xff]
    %v1681 = vld [vmem:[#allocation4 + $0x68] sm:$0xff]
    %v1682 = vld [vmem:[#allocation4 + $0x70] sm:$0xff]
    %v1683 = vld [vmem:[#allocation4 + $0x78] sm:$0xff]
    %v1684 = vld [vmem:[#allocation4 + $0x80] sm:$0xff]
    %v1685 = vld [vmem:[#allocation4 + $0x88] sm:$0xff]
    %v1686 = vld [vmem:[#allocation4 + $0x90] sm:$0xff]
    %v1687 = vld [vmem:[#allocation4 + $0x98] sm:$0xff]
    %v1688 = vld [vmem:[#allocation4 + $0xa0] sm:$0xff]
    %v1689 = vld [vmem:[#allocation4 + $0xa8] sm:$0xff]
    %v1690 = vld [vmem:[#allocation4 + $0xb0] sm:$0xff]
    %v1691 = vld [vmem:[#allocation4 + $0xb8] sm:$0xff]
    %v1692 = vld [vmem:[#allocation4 + $0xc0] sm:$0xff]
    %v1693 = vld [vmem:[#allocation4 + $0xc8] sm:$0xff]
    %v1694 = vld [vmem:[#allocation4 + $0xd0] sm:$0xff]
    %v1695 = vld [vmem:[#allocation4 + $0xd8] sm:$0xff]
    %v1696 = vld [vmem:[#allocation4 + $0xe0] sm:$0xff]
    %v1697 = vld [vmem:[#allocation4 + $0xe8] sm:$0xff]
    %v1698 = vld [vmem:[#allocation4 + $0xf0] sm:$0xff]
    %v1699 = vld [vmem:[#allocation4 + $0xf8] sm:$0xff]
    %v1700 = vld [vmem:[#allocation4 + $0x100] sm:$0xff]
    %v1701 = vld [vmem:[#allocation4 + $0x108] sm:$0xff]
    %v1702 = vld [vmem:[#allocation4 + $0x110] sm:$0xff]
    %v1703 = vld [vmem:[#allocation4 + $0x118] sm:$0xff]
    %v1704 = vld [vmem:[#allocation4 + $0x120] sm:$0xff]
    %v1705 = vld [vmem:[#allocation4 + $0x128] sm:$0xff]
    %v1706 = vld [vmem:[#allocation4 + $0x130] sm:$0xff]
    %v1707 = vld [vmem:[#allocation4 + $0x138] sm:$0xff]
    %v1708 = vld [vmem:[#allocation4 + $0x140] sm:$0xff]
    %v1709 = vld [vmem:[#allocation4 + $0x148] sm:$0xff]
    %v1710 = vld [vmem:[#allocation4 + $0x150] sm:$0xff]
    %v1711 = vld [vmem:[#allocation4 + $0x158] sm:$0xff]
    %v1712 = vld [vmem:[#allocation4 + $0x160] sm:$0xff]
    %v1713 = vld [vmem:[#allocation4 + $0x168] sm:$0xff]
    %v1714 = vld [vmem:[#allocation4 + $0x170] sm:$0xff]
    %v1715 = vld [vmem:[#allocation4 + $0x178] sm:$0xff]
    %v1716 = vld [vmem:[#allocation4 + $0x180] sm:$0xff]
    %v1717 = vld [vmem:[#allocation4 + $0x188] sm:$0xff]
    %v1718 = vld [vmem:[#allocation4 + $0x190] sm:$0xff]
    %v1719 = vld [vmem:[#allocation4 + $0x198] sm:$0xff]
    %v1720 = vld [vmem:[#allocation4 + $0x1a0] sm:$0xff]
    %v1721 = vld [vmem:[#allocation4 + $0x1a8] sm:$0xff]
    %v1722 = vld [vmem:[#allocation4 + $0x1b0] sm:$0xff]
    %v1723 = vld [vmem:[#allocation4 + $0x1b8] sm:$0xff]
    %v1724 = vld [vmem:[#allocation4 + $0x1c0] sm:$0xff]
    %v1725 = vld [vmem:[#allocation4 + $0x1c8] sm:$0xff]
    %v1726 = vld [vmem:[#allocation4 + $0x1d0] sm:$0xff]
    %v1727 = vld [vmem:[#allocation4 + $0x1d8] sm:$0xff]
    %v1728 = vld [vmem:[#allocation4 + $0x1e0] sm:$0xff]
    %v1729 = vld [vmem:[#allocation4 + $0x1e8] sm:$0xff]
    %v1730 = vld [vmem:[#allocation4 + $0x1f0] sm:$0xff]
    %v1731 = vld [vmem:[#allocation4 + $0x1f8] sm:$0xff]
    %1732 = vmatprep.subr.mxu0 %v1669
    %1733 = vmatpush1.msra.mxu0 %v1668
    %1734 = vmatprep.subr.mxu0 %v1673
    %1735 = vmatpush1.msra.mxu0 %v1672
    %1736 = vmatprep.subr.mxu0 %v1677
    %1737 = vmatpush1.msra.mxu0 %v1676
    %1738 = vmatprep.subr.mxu0 %v1681
    %1739 = vmatpush1.msra.mxu0 %v1680
    %1740 = vmatprep.subr.mxu0 %v1685
    %1741 = vmatpush1.msra.mxu0 %v1684
    %1742 = vmatprep.subr.mxu0 %v1689
    %1743 = vmatpush1.msra.mxu0 %v1688
    %1744 = vmatprep.subr.mxu0 %v1693
    %1745 = vmatpush1.msra.mxu0 %v1692
    %1746 = vmatprep.subr.mxu0 %v1697
    %1747 = vmatpush1.msra.mxu0 %v1696
    %1748 = vmatprep.subr.mxu0 %v1701
    %1749 = vmatpush1.msra.mxu0 %v1700
    %1750 = vmatprep.subr.mxu0 %v1705
    %1751 = vmatpush1.msra.mxu0 %v1704
    %1752 = vmatprep.subr.mxu0 %v1709
    %1753 = vmatpush1.msra.mxu0 %v1708
    %1754 = vmatprep.subr.mxu0 %v1713
    %1755 = vmatpush1.msra.mxu0 %v1712
    %1756 = vmatprep.subr.mxu0 %v1717
    %1757 = vmatpush1.msra.mxu0 %v1716
    %1758 = vmatprep.subr.mxu0 %v1721
    %1759 = vmatpush1.msra.mxu0 %v1720
    %1760 = vmatprep.subr.mxu0 %v1725
    %1761 = vmatpush1.msra.mxu0 %v1724
    %1762 = vmatprep.subr.mxu0 %v1729
    %1763 = vmatpush1.msra.mxu0 %v1728
    %1764 = vmatprep.subr.mxu0 0.0
    %1765 = vmatpush1.msra.mxu0 0.0
    %1766 = vmatprep.subr.mxu0 0.0
    %1767 = vmatpush1.msra.mxu0 0.0
    %1768 = vmatprep.subr.mxu0 0.0
    %1769 = vmatpush1.msra.mxu0 0.0
    %1770 = vmatprep.subr.mxu0 0.0
    %1771 = vmatpush1.msra.mxu0 0.0
    %1772 = vmatprep.subr.mxu0 0.0
    %1773 = vmatpush1.msra.mxu0 0.0
    %1774 = vmatprep.subr.mxu0 0.0
    %1775 = vmatpush1.msra.mxu0 0.0
    %1776 = vmatprep.subr.mxu0 0.0
    %1777 = vmatpush1.msra.mxu0 0.0
    %1778 = vmatprep.subr.mxu0 0.0
    %1779 = vmatpush1.msra.mxu0 0.0
    %1780 = vmatprep.subr.mxu0 0.0
    %1781 = vmatpush1.msra.mxu0 0.0
    %1782 = vmatprep.subr.mxu0 0.0
    %1783 = vmatpush1.msra.mxu0 0.0
    %1784 = vmatprep.subr.mxu0 0.0
    %1785 = vmatpush1.msra.mxu0 0.0
    %1786 = vmatprep.subr.mxu0 0.0
    %1787 = vmatpush1.msra.mxu0 0.0
    %1788 = vmatprep.subr.mxu0 0.0
    %1789 = vmatpush1.msra.mxu0 0.0
    %1790 = vmatprep.subr.mxu0 0.0
    %1791 = vmatpush1.msra.mxu0 0.0
    %1792 = vmatprep.subr.mxu0 0.0
    %1793 = vmatpush1.msra.mxu0 0.0
    %1794 = vmatprep.subr.mxu0 0.0
    %1795 = vmatpush1.msra.mxu0 0.0
    %1796 = vmatprep.mubr.f32.mxu0 0.0
    %1797 = vmatmul.mubr.f32.gmra.mrb[0].mxu0 %v1664
    %v1798 = vpop.f32.mrb[0].mxu0
    %v1799 = vadd.f32 0.0, %v1798
    %v1800 = vpop.f32.mrb[0].mxu0
    %v1801 = vadd.f32 0.0, %v1800
    %1802 = vdwg.mxu0
    %1803 = vmatprep.subr.mxu0 %v1671
    %1804 = vmatpush1.msra.mxu0 %v1670
    %1805 = vmatprep.subr.mxu0 %v1675
    %1806 = vmatpush1.msra.mxu0 %v1674
    %1807 = vmatprep.subr.mxu0 %v1679
    %1808 = vmatpush1.msra.mxu0 %v1678
    %1809 = vmatprep.subr.mxu0 %v1683
    %1810 = vmatpush1.msra.mxu0 %v1682
    %1811 = vmatprep.subr.mxu0 %v1687
    %1812 = vmatpush1.msra.mxu0 %v1686
    %1813 = vmatprep.subr.mxu0 %v1691
    %1814 = vmatpush1.msra.mxu0 %v1690
    %1815 = vmatprep.subr.mxu0 %v1695
    %1816 = vmatpush1.msra.mxu0 %v1694
    %1817 = vmatprep.subr.mxu0 %v1699
    %1818 = vmatpush1.msra.mxu0 %v1698
    %1819 = vmatprep.subr.mxu0 %v1703
    %1820 = vmatpush1.msra.mxu0 %v1702
    %1821 = vmatprep.subr.mxu0 %v1707
    %1822 = vmatpush1.msra.mxu0 %v1706
    %1823 = vmatprep.subr.mxu0 %v1711
    %1824 = vmatpush1.msra.mxu0 %v1710
    %1825 = vmatprep.subr.mxu0 %v1715
    %1826 = vmatpush1.msra.mxu0 %v1714
    %1827 = vmatprep.subr.mxu0 %v1719
    %1828 = vmatpush1.msra.mxu0 %v1718
    %1829 = vmatprep.subr.mxu0 %v1723
    %1830 = vmatpush1.msra.mxu0 %v1722
    %1831 = vmatprep.subr.mxu0 %v1727
    %1832 = vmatpush1.msra.mxu0 %v1726
    %1833 = vmatprep.subr.mxu0 %v1731
    %1834 = vmatpush1.msra.mxu0 %v1730
    %1835 = vmatprep.subr.mxu0 0.0
    %1836 = vmatpush1.msra.mxu0 0.0
    %1837 = vmatprep.subr.mxu0 0.0
    %1838 = vmatpush1.msra.mxu0 0.0
    %1839 = vmatprep.subr.mxu0 0.0
    %1840 = vmatpush1.msra.mxu0 0.0
    %1841 = vmatprep.subr.mxu0 0.0
    %1842 = vmatpush1.msra.mxu0 0.0
    %1843 = vmatprep.subr.mxu0 0.0
    %1844 = vmatpush1.msra.mxu0 0.0
    %1845 = vmatprep.subr.mxu0 0.0
    %1846 = vmatpush1.msra.mxu0 0.0
    %1847 = vmatprep.subr.mxu0 0.0
    %1848 = vmatpush1.msra.mxu0 0.0
    %1849 = vmatprep.subr.mxu0 0.0
    %1850 = vmatpush1.msra.mxu0 0.0
    %1851 = vmatprep.subr.mxu0 0.0
    %1852 = vmatpush1.msra.mxu0 0.0
    %1853 = vmatprep.subr.mxu0 0.0
    %1854 = vmatpush1.msra.mxu0 0.0
    %1855 = vmatprep.subr.mxu0 0.0
    %1856 = vmatpush1.msra.mxu0 0.0
    %1857 = vmatprep.subr.mxu0 0.0
    %1858 = vmatpush1.msra.mxu0 0.0
    %1859 = vmatprep.subr.mxu0 0.0
    %1860 = vmatpush1.msra.mxu0 0.0
    %1861 = vmatprep.subr.mxu0 0.0
    %1862 = vmatpush1.msra.mxu0 0.0
    %1863 = vmatprep.subr.mxu0 0.0
    %1864 = vmatpush1.msra.mxu0 0.0
    %1865 = vmatprep.subr.mxu0 0.0
    %1866 = vmatpush1.msra.mxu0 0.0
    %1867 = vmatprep.mubr.f32.mxu0 0.0
    %1868 = vmatmul.mubr.f32.gmra.mrb[0].mxu0 %v1664
    %v1869 = vpop.f32.mrb[0].mxu0
    %v1870 = vadd.f32 0.0, %v1869
    %v1871 = vpop.f32.mrb[0].mxu0
    %v1872 = vadd.f32 0.0, %v1871
    %1873 = vdwg.mxu0
    %v1878 = vcombine.low %v1799, %v1801
    %v1879 = vcombine.low %v1870, %v1872
    %v1881 = vunpack.c.l.s4 1966171168
    %v1882 = vunpack.c.0.s8 %v1881
    %v1883 = vlaneseq
    %v1884 = vshrl.u32 %v1883, 7
    %v1885 = vsub.s32 %v1882, %v1884
    %v1886 = vrot.slane %v1878, %v1885
    %v1888 = vunpack.c.l.s4 1966171168
    %v1889 = vunpack.c.0.s8 %v1888
    %v1890 = vlaneseq
    %v1891 = vshrl.u32 %v1890, 7
    %v1892 = vsub.s32 %v1889, %v1891
    %v1893 = vrot.slane %v1879, %v1892
    %v1894 = vcombine.low %v1886, %v1893
    %v1896 = vunpack.c.l.s4 1966171168
    %v1897 = vunpack.c.0.s8 %v1896
    %v1898 = vlaneseq
    %v1899 = vshrl.u32 %v1898, 7
    %v1900 = vsub.s32 %v1897, %v1899
    %v1901 = vrot.slane %v1894, %v1900
    %v1903 = vadd.f32 %v1667, %v1901
    %v1904 = vxor.u32 %v1903, 2147483648
    %v1905 = vmul.f32 %v1904, 1.442695
    %v1906 = vpow.pop %v1905
    %v1907 = vadd.f32 %v1906, 1.0
    %v1908 = vrcp.pop %v1907
    %v1909 = vmul.f32 1.0, %v1908
    %v1911 = vrot.slane %v1903, 3
    %v1913 = vtanh.pop %v1911
    %v1915 = vrot.slane %v1909, 1
    %v1917 = vmul.f32 %v1915, %v1660
    %v1918 = vmul.f32 %v1909, %v1913
    %v1919 = vadd.f32 %v1917, %v1918
    %v1920 = vtanh.pop %v1919
    %v1921 = vrot.slane %v1909, 2
    %v1923 = vmul.f32 %v1921, %v1920
    %1924 = vst [vmem:[#allocation3 + $0x6] sm:$0x1] %v1923
    %s1925 = scalar_lea.vmem [#allocation2], 7
    %v1926 = vld [vmem:[%s1925] ss:$8 sm:$0xf]
    %v1927 = vld [vmem:[#allocation4] sm:$0xff]
    %v1928 = vld [vmem:[#allocation4 + $0x8] sm:$0xff]
    %v1929 = vld [vmem:[#allocation4 + $0x10] sm:$0xff]
    %v1930 = vld [vmem:[#allocation4 + $0x18] sm:$0xff]
    %v1931 = vld [vmem:[#allocation4 + $0x20] sm:$0xff]
    %v1932 = vld [vmem:[#allocation4 + $0x28] sm:$0xff]
    %v1933 = vld [vmem:[#allocation4 + $0x30] sm:$0xff]
    %v1934 = vld [vmem:[#allocation4 + $0x38] sm:$0xff]
    %v1935 = vld [vmem:[#allocation4 + $0x40] sm:$0xff]
    %v1936 = vld [vmem:[#allocation4 + $0x48] sm:$0xff]
    %v1937 = vld [vmem:[#allocation4 + $0x50] sm:$0xff]
    %v1938 = vld [vmem:[#allocation4 + $0x58] sm:$0xff]
    %v1939 = vld [vmem:[#allocation4 + $0x60] sm:$0xff]
    %v1940 = vld [vmem:[#allocation4 + $0x68] sm:$0xff]
    %v1941 = vld [vmem:[#allocation4 + $0x70] sm:$0xff]
    %v1942 = vld [vmem:[#allocation4 + $0x78] sm:$0xff]
    %v1943 = vld [vmem:[#allocation4 + $0x80] sm:$0xff]
    %v1944 = vld [vmem:[#allocation4 + $0x88] sm:$0xff]
    %v1945 = vld [vmem:[#allocation4 + $0x90] sm:$0xff]
    %v1946 = vld [vmem:[#allocation4 + $0x98] sm:$0xff]
    %v1947 = vld [vmem:[#allocation4 + $0xa0] sm:$0xff]
    %v1948 = vld [vmem:[#allocation4 + $0xa8] sm:$0xff]
    %v1949 = vld [vmem:[#allocation4 + $0xb0] sm:$0xff]
    %v1950 = vld [vmem:[#allocation4 + $0xb8] sm:$0xff]
    %v1951 = vld [vmem:[#allocation4 + $0xc0] sm:$0xff]
    %v1952 = vld [vmem:[#allocation4 + $0xc8] sm:$0xff]
    %v1953 = vld [vmem:[#allocation4 + $0xd0] sm:$0xff]
    %v1954 = vld [vmem:[#allocation4 + $0xd8] sm:$0xff]
    %v1955 = vld [vmem:[#allocation4 + $0xe0] sm:$0xff]
    %v1956 = vld [vmem:[#allocation4 + $0xe8] sm:$0xff]
    %v1957 = vld [vmem:[#allocation4 + $0xf0] sm:$0xff]
    %v1958 = vld [vmem:[#allocation4 + $0xf8] sm:$0xff]
    %v1959 = vld [vmem:[#allocation4 + $0x100] sm:$0xff]
    %v1960 = vld [vmem:[#allocation4 + $0x108] sm:$0xff]
    %v1961 = vld [vmem:[#allocation4 + $0x110] sm:$0xff]
    %v1962 = vld [vmem:[#allocation4 + $0x118] sm:$0xff]
    %v1963 = vld [vmem:[#allocation4 + $0x120] sm:$0xff]
    %v1964 = vld [vmem:[#allocation4 + $0x128] sm:$0xff]
    %v1965 = vld [vmem:[#allocation4 + $0x130] sm:$0xff]
    %v1966 = vld [vmem:[#allocation4 + $0x138] sm:$0xff]
    %v1967 = vld [vmem:[#allocation4 + $0x140] sm:$0xff]
    %v1968 = vld [vmem:[#allocation4 + $0x148] sm:$0xff]
    %v1969 = vld [vmem:[#allocation4 + $0x150] sm:$0xff]
    %v1970 = vld [vmem:[#allocation4 + $0x158] sm:$0xff]
    %v1971 = vld [vmem:[#allocation4 + $0x160] sm:$0xff]
    %v1972 = vld [vmem:[#allocation4 + $0x168] sm:$0xff]
    %v1973 = vld [vmem:[#allocation4 + $0x170] sm:$0xff]
    %v1974 = vld [vmem:[#allocation4 + $0x178] sm:$0xff]
    %v1975 = vld [vmem:[#allocation4 + $0x180] sm:$0xff]
    %v1976 = vld [vmem:[#allocation4 + $0x188] sm:$0xff]
    %v1977 = vld [vmem:[#allocation4 + $0x190] sm:$0xff]
    %v1978 = vld [vmem:[#allocation4 + $0x198] sm:$0xff]
    %v1979 = vld [vmem:[#allocation4 + $0x1a0] sm:$0xff]
    %v1980 = vld [vmem:[#allocation4 + $0x1a8] sm:$0xff]
    %v1981 = vld [vmem:[#allocation4 + $0x1b0] sm:$0xff]
    %v1982 = vld [vmem:[#allocation4 + $0x1b8] sm:$0xff]
    %v1983 = vld [vmem:[#allocation4 + $0x1c0] sm:$0xff]
    %v1984 = vld [vmem:[#allocation4 + $0x1c8] sm:$0xff]
    %v1985 = vld [vmem:[#allocation4 + $0x1d0] sm:$0xff]
    %v1986 = vld [vmem:[#allocation4 + $0x1d8] sm:$0xff]
    %v1987 = vld [vmem:[#allocation4 + $0x1e0] sm:$0xff]
    %v1988 = vld [vmem:[#allocation4 + $0x1e8] sm:$0xff]
    %v1989 = vld [vmem:[#allocation4 + $0x1f0] sm:$0xff]
    %v1990 = vld [vmem:[#allocation4 + $0x1f8] sm:$0xff]
    %1991 = vmatprep.subr.mxu0 %v1928
    %1992 = vmatpush1.msra.mxu0 %v1927
    %1993 = vmatprep.subr.mxu0 %v1932
    %1994 = vmatpush1.msra.mxu0 %v1931
    %1995 = vmatprep.subr.mxu0 %v1936
    %1996 = vmatpush1.msra.mxu0 %v1935
    %1997 = vmatprep.subr.mxu0 %v1940
    %1998 = vmatpush1.msra.mxu0 %v1939
    %1999 = vmatprep.subr.mxu0 %v1944
    %2000 = vmatpush1.msra.mxu0 %v1943
    %2001 = vmatprep.subr.mxu0 %v1948
    %2002 = vmatpush1.msra.mxu0 %v1947
    %2003 = vmatprep.subr.mxu0 %v1952
    %2004 = vmatpush1.msra.mxu0 %v1951
    %2005 = vmatprep.subr.mxu0 %v1956
    %2006 = vmatpush1.msra.mxu0 %v1955
    %2007 = vmatprep.subr.mxu0 %v1960
    %2008 = vmatpush1.msra.mxu0 %v1959
    %2009 = vmatprep.subr.mxu0 %v1964
    %2010 = vmatpush1.msra.mxu0 %v1963
    %2011 = vmatprep.subr.mxu0 %v1968
    %2012 = vmatpush1.msra.mxu0 %v1967
    %2013 = vmatprep.subr.mxu0 %v1972
    %2014 = vmatpush1.msra.mxu0 %v1971
    %2015 = vmatprep.subr.mxu0 %v1976
    %2016 = vmatpush1.msra.mxu0 %v1975
    %2017 = vmatprep.subr.mxu0 %v1980
    %2018 = vmatpush1.msra.mxu0 %v1979
    %2019 = vmatprep.subr.mxu0 %v1984
    %2020 = vmatpush1.msra.mxu0 %v1983
    %2021 = vmatprep.subr.mxu0 %v1988
    %2022 = vmatpush1.msra.mxu0 %v1987
    %2023 = vmatprep.subr.mxu0 0.0
    %2024 = vmatpush1.msra.mxu0 0.0
    %2025 = vmatprep.subr.mxu0 0.0
    %2026 = vmatpush1.msra.mxu0 0.0
    %2027 = vmatprep.subr.mxu0 0.0
    %2028 = vmatpush1.msra.mxu0 0.0
    %2029 = vmatprep.subr.mxu0 0.0
    %2030 = vmatpush1.msra.mxu0 0.0
    %2031 = vmatprep.subr.mxu0 0.0
    %2032 = vmatpush1.msra.mxu0 0.0
    %2033 = vmatprep.subr.mxu0 0.0
    %2034 = vmatpush1.msra.mxu0 0.0
    %2035 = vmatprep.subr.mxu0 0.0
    %2036 = vmatpush1.msra.mxu0 0.0
    %2037 = vmatprep.subr.mxu0 0.0
    %2038 = vmatpush1.msra.mxu0 0.0
    %2039 = vmatprep.subr.mxu0 0.0
    %2040 = vmatpush1.msra.mxu0 0.0
    %2041 = vmatprep.subr.mxu0 0.0
    %2042 = vmatpush1.msra.mxu0 0.0
    %2043 = vmatprep.subr.mxu0 0.0
    %2044 = vmatpush1.msra.mxu0 0.0
    %2045 = vmatprep.subr.mxu0 0.0
    %2046 = vmatpush1.msra.mxu0 0.0
    %2047 = vmatprep.subr.mxu0 0.0
    %2048 = vmatpush1.msra.mxu0 0.0
    %2049 = vmatprep.subr.mxu0 0.0
    %2050 = vmatpush1.msra.mxu0 0.0
    %2051 = vmatprep.subr.mxu0 0.0
    %2052 = vmatpush1.msra.mxu0 0.0
    %2053 = vmatprep.subr.mxu0 0.0
    %2054 = vmatpush1.msra.mxu0 0.0
    %2055 = vmatprep.mubr.f32.mxu0 0.0
    %2056 = vmatmul.mubr.f32.gmra.mrb[0].mxu0 %v1923
    %v2057 = vpop.f32.mrb[0].mxu0
    %v2058 = vadd.f32 0.0, %v2057
    %v2059 = vpop.f32.mrb[0].mxu0
    %v2060 = vadd.f32 0.0, %v2059
    %2061 = vdwg.mxu0
    %2062 = vmatprep.subr.mxu0 %v1930
    %2063 = vmatpush1.msra.mxu0 %v1929
    %2064 = vmatprep.subr.mxu0 %v1934
    %2065 = vmatpush1.msra.mxu0 %v1933
    %2066 = vmatprep.subr.mxu0 %v1938
    %2067 = vmatpush1.msra.mxu0 %v1937
    %2068 = vmatprep.subr.mxu0 %v1942
    %2069 = vmatpush1.msra.mxu0 %v1941
    %2070 = vmatprep.subr.mxu0 %v1946
    %2071 = vmatpush1.msra.mxu0 %v1945
    %2072 = vmatprep.subr.mxu0 %v1950
    %2073 = vmatpush1.msra.mxu0 %v1949
    %2074 = vmatprep.subr.mxu0 %v1954
    %2075 = vmatpush1.msra.mxu0 %v1953
    %2076 = vmatprep.subr.mxu0 %v1958
    %2077 = vmatpush1.msra.mxu0 %v1957
    %2078 = vmatprep.subr.mxu0 %v1962
    %2079 = vmatpush1.msra.mxu0 %v1961
    %2080 = vmatprep.subr.mxu0 %v1966
    %2081 = vmatpush1.msra.mxu0 %v1965
    %2082 = vmatprep.subr.mxu0 %v1970
    %2083 = vmatpush1.msra.mxu0 %v1969
    %2084 = vmatprep.subr.mxu0 %v1974
    %2085 = vmatpush1.msra.mxu0 %v1973
    %2086 = vmatprep.subr.mxu0 %v1978
    %2087 = vmatpush1.msra.mxu0 %v1977
    %2088 = vmatprep.subr.mxu0 %v1982
    %2089 = vmatpush1.msra.mxu0 %v1981
    %2090 = vmatprep.subr.mxu0 %v1986
    %2091 = vmatpush1.msra.mxu0 %v1985
    %2092 = vmatprep.subr.mxu0 %v1990
    %2093 = vmatpush1.msra.mxu0 %v1989
    %2094 = vmatprep.subr.mxu0 0.0
    %2095 = vmatpush1.msra.mxu0 0.0
    %2096 = vmatprep.subr.mxu0 0.0
    %2097 = vmatpush1.msra.mxu0 0.0
    %2098 = vmatprep.subr.mxu0 0.0
    %2099 = vmatpush1.msra.mxu0 0.0
    %2100 = vmatprep.subr.mxu0 0.0
    %2101 = vmatpush1.msra.mxu0 0.0
    %2102 = vmatprep.subr.mxu0 0.0
    %2103 = vmatpush1.msra.mxu0 0.0
    %2104 = vmatprep.subr.mxu0 0.0
    %2105 = vmatpush1.msra.mxu0 0.0
    %2106 = vmatprep.subr.mxu0 0.0
    %2107 = vmatpush1.msra.mxu0 0.0
    %2108 = vmatprep.subr.mxu0 0.0
    %2109 = vmatpush1.msra.mxu0 0.0
    %2110 = vmatprep.subr.mxu0 0.0
    %2111 = vmatpush1.msra.mxu0 0.0
    %2112 = vmatprep.subr.mxu0 0.0
    %2113 = vmatpush1.msra.mxu0 0.0
    %2114 = vmatprep.subr.mxu0 0.0
    %2115 = vmatpush1.msra.mxu0 0.0
    %2116 = vmatprep.subr.mxu0 0.0
    %2117 = vmatpush1.msra.mxu0 0.0
    %2118 = vmatprep.subr.mxu0 0.0
    %2119 = vmatpush1.msra.mxu0 0.0
    %2120 = vmatprep.subr.mxu0 0.0
    %2121 = vmatpush1.msra.mxu0 0.0
    %2122 = vmatprep.subr.mxu0 0.0
    %2123 = vmatpush1.msra.mxu0 0.0
    %2124 = vmatprep.subr.mxu0 0.0
    %2125 = vmatpush1.msra.mxu0 0.0
    %2126 = vmatprep.mubr.f32.mxu0 0.0
    %2127 = vmatmul.mubr.f32.gmra.mrb[0].mxu0 %v1923
    %v2128 = vpop.f32.mrb[0].mxu0
    %v2129 = vadd.f32 0.0, %v2128
    %v2130 = vpop.f32.mrb[0].mxu0
    %v2131 = vadd.f32 0.0, %v2130
    %2132 = vdwg.mxu0
    %v2137 = vcombine.low %v2058, %v2060
    %v2138 = vcombine.low %v2129, %v2131
    %v2140 = vunpack.c.l.s4 1966171168
    %v2141 = vunpack.c.0.s8 %v2140
    %v2142 = vlaneseq
    %v2143 = vshrl.u32 %v2142, 7
    %v2144 = vsub.s32 %v2141, %v2143
    %v2145 = vrot.slane %v2137, %v2144
    %v2147 = vunpack.c.l.s4 1966171168
    %v2148 = vunpack.c.0.s8 %v2147
    %v2149 = vlaneseq
    %v2150 = vshrl.u32 %v2149, 7
    %v2151 = vsub.s32 %v2148, %v2150
    %v2152 = vrot.slane %v2138, %v2151
    %v2153 = vcombine.low %v2145, %v2152
    %v2155 = vunpack.c.l.s4 1966171168
    %v2156 = vunpack.c.0.s8 %v2155
    %v2157 = vlaneseq
    %v2158 = vshrl.u32 %v2157, 7
    %v2159 = vsub.s32 %v2156, %v2158
    %v2160 = vrot.slane %v2153, %v2159
    %v2162 = vadd.f32 %v1926, %v2160
    %v2163 = vxor.u32 %v2162, 2147483648
    %v2164 = vmul.f32 %v2163, 1.442695
    %v2165 = vpow.pop %v2164
    %v2166 = vadd.f32 %v2165, 1.0
    %v2167 = vrcp.pop %v2166
    %v2168 = vmul.f32 1.0, %v2167
    %v2170 = vrot.slane %v2162, 3
    %v2172 = vtanh.pop %v2170
    %v2174 = vrot.slane %v2168, 1
    %v2176 = vmul.f32 %v2174, %v1919
    %v2177 = vmul.f32 %v2168, %v2172
    %v2178 = vadd.f32 %v2176, %v2177
    %v2179 = vtanh.pop %v2178
    %v2180 = vrot.slane %v2168, 2
    %v2182 = vmul.f32 %v2180, %v2179
    %2183 = vst [vmem:[#allocation3 + $0x7] sm:$0x1] %v2182
    %v2184 = vld [vmem:[#allocation3] sm:$0xff]
    %v2185 = vld [vmem:[#allocation6] sm:$0xff]
    %v2186 = vld [vmem:[#allocation6 + $0x8] sm:$0xff]
    %v2187 = vld [vmem:[#allocation6 + $0x10] sm:$0xff]
    %v2188 = vld [vmem:[#allocation6 + $0x18] sm:$0xff]
    %v2189 = vld [vmem:[#allocation6 + $0x20] sm:$0xff]
    %v2190 = vld [vmem:[#allocation6 + $0x28] sm:$0xff]
    %v2191 = vld [vmem:[#allocation6 + $0x30] sm:$0xff]
    %v2192 = vld [vmem:[#allocation6 + $0x38] sm:$0xff]
    %v2193 = vld [vmem:[#allocation6 + $0x40] sm:$0xff]
    %v2194 = vld [vmem:[#allocation6 + $0x48] sm:$0xff]
    %v2195 = vld [vmem:[#allocation6 + $0x50] sm:$0xff]
    %v2196 = vld [vmem:[#allocation6 + $0x58] sm:$0xff]
    %v2197 = vld [vmem:[#allocation6 + $0x60] sm:$0xff]
    %v2198 = vld [vmem:[#allocation6 + $0x68] sm:$0xff]
    %v2199 = vld [vmem:[#allocation6 + $0x70] sm:$0xff]
    %v2200 = vld [vmem:[#allocation6 + $0x78] sm:$0xff]
    %v2201 = vld [vmem:[%s5] sm:$0x1]
    %v2203 = vlaneseq
    %v2204 = vshrl.u32 %v2203, 7
    %v2205 = vsub.s32 0, %v2204
    %v2206 = vrot.slane %v2201, %v2205
    %2208 = vmatprep.subr.mxu0 0.0
    %2209 = vmatpush1.msra.mxu0 %v2185
    %2210 = vmatprep.subr.mxu0 0.0
    %2211 = vmatpush1.msra.mxu0 %v2186
    %2212 = vmatprep.subr.mxu0 0.0
    %2213 = vmatpush1.msra.mxu0 %v2187
    %2214 = vmatprep.subr.mxu0 0.0
    %2215 = vmatpush1.msra.mxu0 %v2188
    %2216 = vmatprep.subr.mxu0 0.0
    %2217 = vmatpush1.msra.mxu0 %v2189
    %2218 = vmatprep.subr.mxu0 0.0
    %2219 = vmatpush1.msra.mxu0 %v2190
    %2220 = vmatprep.subr.mxu0 0.0
    %2221 = vmatpush1.msra.mxu0 %v2191
    %2222 = vmatprep.subr.mxu0 0.0
    %2223 = vmatpush1.msra.mxu0 %v2192
    %2224 = vmatprep.subr.mxu0 0.0
    %2225 = vmatpush1.msra.mxu0 %v2193
    %2226 = vmatprep.subr.mxu0 0.0
    %2227 = vmatpush1.msra.mxu0 %v2194
    %2228 = vmatprep.subr.mxu0 0.0
    %2229 = vmatpush1.msra.mxu0 %v2195
    %2230 = vmatprep.subr.mxu0 0.0
    %2231 = vmatpush1.msra.mxu0 %v2196
    %2232 = vmatprep.subr.mxu0 0.0
    %2233 = vmatpush1.msra.mxu0 %v2197
    %2234 = vmatprep.subr.mxu0 0.0
    %2235 = vmatpush1.msra.mxu0 %v2198
    %2236 = vmatprep.subr.mxu0 0.0
    %2237 = vmatpush1.msra.mxu0 %v2199
    %2238 = vmatprep.subr.mxu0 0.0
    %2239 = vmatpush1.msra.mxu0 %v2200
    %2240 = vmatprep.subr.mxu0 0.0
    %2241 = vmatpush1.msra.mxu0 0.0
    %2242 = vmatprep.subr.mxu0 0.0
    %2243 = vmatpush1.msra.mxu0 0.0
    %2244 = vmatprep.subr.mxu0 0.0
    %2245 = vmatpush1.msra.mxu0 0.0
    %2246 = vmatprep.subr.mxu0 0.0
    %2247 = vmatpush1.msra.mxu0 0.0
    %2248 = vmatprep.subr.mxu0 0.0
    %2249 = vmatpush1.msra.mxu0 0.0
    %2250 = vmatprep.subr.mxu0 0.0
    %2251 = vmatpush1.msra.mxu0 0.0
    %2252 = vmatprep.subr.mxu0 0.0
    %2253 = vmatpush1.msra.mxu0 0.0
    %2254 = vmatprep.subr.mxu0 0.0
    %2255 = vmatpush1.msra.mxu0 0.0
    %2256 = vmatprep.subr.mxu0 0.0
    %2257 = vmatpush1.msra.mxu0 0.0
    %2258 = vmatprep.subr.mxu0 0.0
    %2259 = vmatpush1.msra.mxu0 0.0
    %2260 = vmatprep.subr.mxu0 0.0
    %2261 = vmatpush1.msra.mxu0 0.0
    %2262 = vmatprep.subr.mxu0 0.0
    %2263 = vmatpush1.msra.mxu0 0.0
    %2264 = vmatprep.subr.mxu0 0.0
    %2265 = vmatpush1.msra.mxu0 0.0
    %2266 = vmatprep.subr.mxu0 0.0
    %2267 = vmatpush1.msra.mxu0 0.0
    %2268 = vmatprep.subr.mxu0 0.0
    %2269 = vmatpush1.msra.mxu0 0.0
    %2270 = vmatprep.subr.mxu0 0.0
    %2271 = vmatpush1.msra.mxu0 0.0
    %2272 = vmatprep.mubr.f32.mxu0 0.0
    %2273 = vmatmul.mubr.f32.gmra.mrb[0].mxu0 %v2184
    %v2274 = vpop.f32.mrb[0].mxu0
    %v2275 = vadd.f32 %v2206, %v2274
    %v2276 = vpop.f32.mrb[0].mxu0
    %2277 = vdwg.mxu0
    %2278 = vst [vmem:[%s6] sm:$0xff] %v2275
    // Predicated region
    $region34: #{forward.1} parent=1 // pred_check
      _
    $region35: #{forward.1} parent=1 // pred_check_branch
      %2280 = sbr.rel (0) target = $region37
    $region36: #{forward.1} parent=1 // pred_region
      _
    $region37: #{forward.1} parent=1 // pred_fallthru
      _
    // Predicated region
    $region38: #{forward.1} parent=1 // pred_check
      _
    $region39: #{forward.1} parent=1 // pred_check_branch
      %2282 = sbr.rel (0) target = $region41
    $region40: #{forward.1} parent=1 // pred_region
      _
    $region41: #{forward.1} parent=1 // pred_fallthru
      _
    %2283 = vsyncpa [#allocation5], 1
    %2284 = vsyncpa [#allocation7], 1

</llo_original>
